<compile_context>
chip_gen: v7x
topology: tpu7x:2x2x1
jax: 0.10.0
libtpu: 0.0.40
codegen_flags: <defaults>
</compile_context>

<pallas_src>
import jax
import jax.numpy as jnp
from jax.experimental import pallas as pl
from jax.experimental.pallas import tpu as pltpu


# --------------------------------------------------------------------------- #
# Kernel
# --------------------------------------------------------------------------- #
def _upsample_conv_kernel(xp_ref, w_ref, b_ref, o_ref):
    """Fused nearest-2x upsample + 3x3 SAME conv (phase decomposed).

    xp_ref: (1, H+2, W+2, Cin)     zero-padded ORIGINAL-resolution NHWC input
    w_ref : (2, 6*Cin, 2*Cout)     phase-combined weights:
                                   [row phase pi] -> (row tap a, col tap, ci) x (pj, co)
    b_ref : (1, 1, 2*Cout)         bias tiled over pj (f32)
    o_ref : (1, TH, 2, W, 2*Cout)  output tile; HBM layout (N, H, 2, W, 2*Cout)
                                   is row-major identical to (N, 2H, 2W, Cout)
    """
    _, th, _, w, two_co = o_ref.shape
    ci = xp_ref.shape[-1]
    t = pl.program_id(1)

    # TH+2 padded-original rows cover every row tap of this output tile.
    row0 = t * th
    if th % 8 == 0:                       # static: give the compiler alignment
        row0 = pl.multiple_of(row0, 8)
    xrows = xp_ref[0, pl.ds(row0, th + 2), :, :]                # (TH+2, W+2, Ci)

    # Column-union im2col: taps at cols j, j+1, j+2 stacked on the contraction
    # axis.  Built + reshaped ONCE per grid step and shared by both row phases;
    # the per-phase LHS slabs below are aligned sublane slices of this copy.
    patch = jnp.concatenate(
        [xrows[:, 0:w, :], xrows[:, 1:w + 1, :], xrows[:, 2:w + 2, :]],
        axis=-1)                                                # (TH+2, W, 3*Ci)
    patch2d = patch.reshape((th + 2) * w, 3 * ci)               # ((TH+2)*W, 3*Ci)

    bias = b_ref[...].astype(jnp.float32)                       # (1, 1, 2*Co)

    for pi in range(2):                                         # output row phase
        # Row taps a = 0, 1 folded into the contraction axis: ONE deeper-K
        # matmul per phase (2 per tile) instead of 4 matmuls + f32 adds.
        lhs = jnp.concatenate(
            [patch2d[pi * w:(pi + th) * w],
             patch2d[(pi + 1) * w:(pi + 1 + th) * w]],
            axis=-1)                                            # (TH*W, 6*Ci)
        acc = jnp.dot(lhs, w_ref[pi], preferred_element_type=jnp.float32)
        acc = acc.reshape(th, w, two_co) + bias                 # bias added once
        o_ref[0, :, pi, :, :] = acc.astype(o_ref.dtype)


# --------------------------------------------------------------------------- #
# Weight / helper construction
# --------------------------------------------------------------------------- #
def _phase_weights(w_oihw, compute_dtype):
    """(Cout, Cin, 3, 3) OIHW -> (2, 6*Cin, 2*Cout) phase-combined weight slabs.

    Contraction order per row phase pi: (row tap a, col tap ct, ci); output
    column order: (col phase pj, co) -- matching the kernel's LHS / store order.
    """
    w = jnp.transpose(w_oihw, (2, 3, 1, 0)).astype(jnp.float32)  # (kh, kw, Ci, Co)
    ci, co = w.shape[2], w.shape[3]
    # nearest-2x row phases: output row 2i+pi reads original rows i + pi + a - 1.
    k = [[w[0], w[1] + w[2]],              # pi = 0: a=0 -> w0,    a=1 -> w1+w2
         [w[0] + w[1], w[2]]]              # pi = 1: a=0 -> w0+w1, a=1 -> w2
    slabs = []
    for pi in range(2):
        taps = []
        for a in range(2):
            kk = k[pi][a]                  # (3, Ci, Co), indexed by original kw
            z = jnp.zeros_like(kk[0])
            pj0 = jnp.stack([kk[0], kk[1] + kk[2], z], axis=0)   # col taps 0,1,2
            pj1 = jnp.stack([z, kk[0] + kk[1], kk[2]], axis=0)
            u = jnp.stack([pj0, pj1], axis=2)                    # (3, Ci, 2, Co)
            taps.append(u.reshape(3 * ci, 2 * co))
        slabs.append(jnp.concatenate(taps, axis=0))              # (6*Ci, 2*Co)
    return jnp.stack(slabs, axis=0).astype(compute_dtype)        # (2, 6Ci, 2Co)


def _vmem_block_bytes(shape, dtype):
    """Bytes of a VMEM block including (sublane, lane) tiling padding."""
    item = jnp.dtype(dtype).itemsize
    sub = 8 * max(1, 4 // item)            # 8 rows (f32) / 16 (bf16) / 32 (i8)
    s = list(shape)
    if s:
        s[-1] = -(-s[-1] // 128) * 128
    if len(s) >= 2:
        s[-2] = -(-s[-2] // sub) * sub
    n = 1
    for d in s:
        n *= int(d)
    return n * item


def _vmem_limit_bytes():
    """Per-generation scoped-VMEM budget: ~100 MiB on v5e/v6e (128 MiB physical),
    ~48 MiB on v7x (64 MiB physical); conservative fallback if the query fails."""
    try:
        cap = int(pltpu.get_tpu_info().vmem_capacity_bytes)
    except Exception:
        cap = 64 << 20
    return int(max(32 << 20, min(cap - (16 << 20), 100 << 20)))


# --------------------------------------------------------------------------- #
# Wrappers
# --------------------------------------------------------------------------- #
def upsample_forward_nhwc(x_nhwc, w_oihw, b, *, compute_dtype=jnp.bfloat16,
                          out_dtype=None, row_tile=None, single_buffer_input=None):
    """Nearest-2x upsample + 3x3 SAME conv.  NHWC in -> NHWC out.

    Use this entry point when the surrounding model is NHWC: it pays no
    full-size output transpose (the (N,H,2,W,2*Cout) kernel output is reshaped,
    not transposed, into (N,2H,2W,Cout))."""
    n, h, w, cin = x_nhwc.shape
    cout, cin_w, kh, kw = w_oihw.shape
    assert (cin_w, kh, kw) == (cin, 3, 3), (w_oihw.shape, cin)
    out_dtype = x_nhwc.dtype if out_dtype is None else out_dtype

    vmem_limit = _vmem_limit_bytes()

    # The whole padded image stays resident per batch element (it only changes on
    # the slow batch axis).  Single-buffer it if double buffering would eat too
    # much of the budget (matters on v7x's 64 MiB VMEM at large images).
    in_block_bytes = _vmem_block_bytes((h + 2, w + 2, cin), compute_dtype)
    if single_buffer_input is None:
        single_buffer_input = 2 * in_block_bytes > vmem_limit // 3
    in_bufs = 1 if single_buffer_input else 2

    def tile_bytes(th):
        out_blk = _vmem_block_bytes((th, 2, w, 2 * cout), out_dtype)
        tmp = (_vmem_block_bytes((th + 2, w + 2, cin), compute_dtype)            # xrows
               + 2 * _vmem_block_bytes(((th + 2) * w, 3 * cin), compute_dtype)   # patch
               + _vmem_block_bytes((th * w, 6 * cin), compute_dtype)             # lhs
               + _vmem_block_bytes((th * w, 2 * cout), jnp.float32))              # acc
        wts = _vmem_block_bytes((2, 6 * cin, 2 * cout), compute_dtype)
        return in_bufs * in_block_bytes + 2 * out_blk + tmp + wts + (256 << 10)

    if row_tile is None:
        # Row tile: a multiple of 8 (sublane aligned) dividing H, big enough to
        # amortize the ~0.35us per-grid-step overhead, small enough for VMEM.
        divisors = [t for t in range(1, h + 1) if h % t == 0]
        cands = [t for t in divisors if t % 8 == 0] or divisors
        budget = int(0.7 * vmem_limit)
        fitting = [t for t in cands if tile_bytes(t) <= budget]
        if not fitting:
            fitting = ([t for t in divisors if tile_bytes(t) <= budget]
                       or [min(divisors)])
        enough = [t for t in fitting if t * w >= 4096]
        th = min(enough) if enough else max(fitting)
    else:
        assert h % row_tile == 0, (h, row_tile)
        th = row_tile
    n_t = h // th

    # Layout work happens only on the SMALL pre-upsample tensor (4x less data than
    # the output).  TODO(synk): fold this pad into the kernel (zero-fill the edge
    # taps) to save one small-tensor HBM pass.
    xp = jnp.pad(x_nhwc.astype(compute_dtype), ((0, 0), (1, 1), (1, 1), (0, 0)))

    w_slab = _phase_weights(w_oihw, compute_dtype)               # (2, 6Ci, 2Co)
    b_t = jnp.tile(b.astype(jnp.float32), 2).reshape(1, 1, 2 * cout)

    in_block = (1, h + 2, w + 2, cin)
    in_map = lambda i, t: (i, 0, 0, 0)
    if single_buffer_input:
        # The input only changes on the slow batch axis; one buffer is enough.
        # TODO(synk): for images too large even single-buffered, use
        # memory_space=pl.ANY + manual TH+2-row halo DMA instead.
        xp_spec = pl.BlockSpec(in_block, in_map, pipeline_mode=pl.Buffered(1))
    else:
        xp_spec = pl.BlockSpec(in_block, in_map)

    # Batch axis parallel: v7x's two TensorCores each take whole images, so the
    # resident per-image input DMA is not duplicated per core.  Only when there
    # is a single image do we let the row-tile axis be split instead.
    dim_sem = ("parallel", "parallel" if n == 1 else "arbitrary")

    out5 = pl.pallas_call(
        _upsample_conv_kernel,
        out_shape=jax.ShapeDtypeStruct((n, h, 2, w, 2 * cout), out_dtype),
        grid_spec=pltpu.PrefetchScalarGridSpec(
            num_scalar_prefetch=0,
            grid=(n, n_t),
            in_specs=[
                xp_spec,
                pl.BlockSpec((2, 6 * cin, 2 * cout), lambda i, t: (0, 0, 0)),
                pl.BlockSpec((1, 1, 2 * cout), lambda i, t: (0, 0, 0)),
            ],
            out_specs=pl.BlockSpec((1, th, 2, w, 2 * cout),
                                   lambda i, t: (i, t, 0, 0, 0)),
        ),
        compiler_params=pltpu.CompilerParams(
            dimension_semantics=dim_sem,
            vmem_limit_bytes=vmem_limit,
        ),
    )(xp, w_slab, b_t)

    # (N, H, 2, W, 2*Cout) is bit-identical (row-major) to (N, 2H, 2W, Cout).
    return out5.reshape(n, 2 * h, 2 * w, cout)


def upsample_forward(x_nchw, w_oihw, b, **kwargs):
    """PyTorch-layout wrapper: NCHW in -> NCHW out (matches Upsample.forward)."""
    x_nhwc = jnp.transpose(x_nchw, (0, 2, 3, 1))
    out_nhwc = upsample_forward_nhwc(x_nhwc, w_oihw, b, **kwargs)
    # TODO(synk): keep the surrounding model NHWC end-to-end; this transpose of
    # the 4x-upsampled output costs ~2x the kernel's own HBM traffic.
    return jnp.transpose(out_nhwc, (0, 3, 1, 2))


# --------------------------------------------------------------------------- #
# Test
# --------------------------------------------------------------------------- #
if __name__ == "__main__":
    key = jax.random.PRNGKey(0)
    k_x, k_w, k_b = jax.random.split(key, 3)

    n, c, h, w = 2, 4, 16, 16
    x = jax.random.normal(k_x, (n, c, h, w), dtype=jnp.float32)

    # nn.Conv2d default init: U(-1/sqrt(fan_in), 1/sqrt(fan_in)), fan_in = C*3*3
    fan_in = c * 3 * 3
    bound = 1.0 / (fan_in ** 0.5)
    wgt = jax.random.uniform(k_w, (c, c, 3, 3), jnp.float32, -bound, bound)  # OIHW
    bias = jax.random.uniform(k_b, (c,), jnp.float32, -bound, bound)

    # f32 XLA reference: nearest-2x upsample + SAME 3x3 conv + bias.
    x_up = jnp.repeat(jnp.repeat(x, 2, axis=2), 2, axis=3)
    ref = jax.lax.conv_general_dilated(
        x_up, wgt, window_strides=(1, 1), padding="SAME",
        dimension_numbers=("NCHW", "OIHW", "NCHW"),
    ) + bias.reshape(1, c, 1, 1)

    # 1) exact-math check of the phase decomposition (f32 operands).
    out_f32 = jax.block_until_ready(
        upsample_forward(x, wgt, bias, compute_dtype=jnp.float32))
    assert out_f32.shape == (n, c, 2 * h, 2 * w), out_f32.shape
    assert jnp.allclose(out_f32, ref, atol=1e-4, rtol=1e-4), float(
        jnp.max(jnp.abs(out_f32 - ref)))

    # 2) default fast path: bf16 operands, f32 accumulation.
    out = jax.block_until_ready(upsample_forward(x, wgt, bias))
    assert out.shape == (n, c, 2 * h, 2 * w), out.shape
    err = float(jnp.max(jnp.abs(out - ref)))
    assert err < 1e-1, err

    print("KERNEL_OK")
</pallas_src>

<mosaic_0001>
module attributes {stable_mosaic.version = 11 : i64} {
  func.func @_upsample_conv_kernel(%arg0: i32, %arg1: i32, %arg2: memref<1x18x18x4xf32, #tpu.memory_space<vmem>>, %arg3: memref<2x24x8xf32, #tpu.memory_space<vmem>>, %arg4: memref<1x1x8xf32, #tpu.memory_space<vmem>>, %arg5: memref<1x16x2x16x8xf32, #tpu.memory_space<vmem>>) attributes {dimension_semantics = [#tpu.dimension_semantics<parallel>, #tpu.dimension_semantics<arbitrary>], iteration_bounds = array<i64: 2, 1>, scalar_prefetch = 0 : i64, scratch_operands = 0 : i64, tpu.core_type = #tpu.core_type<tc>, window_params = [{transform_indices = @transform_0, window_bounds = array<i64: 1, 18, 18, 4>}, {pipeline_mode = #tpu.pipeline_mode<synchronous>, transform_indices = @transform_1, window_bounds = array<i64: 2, 24, 8>}, {pipeline_mode = #tpu.pipeline_mode<synchronous>, transform_indices = @transform_2, window_bounds = array<i64: 1, 1, 8>}, {transform_indices = @transform_3, window_bounds = array<i64: 1, 16, 2, 16, 8>}]} {
    %c16_i32 = arith.constant 16 : i32
    %0 = arith.muli %arg1, %c16_i32 : i32
    %1 = tpu.assume_multiple %0, 8 : i32
    %c0 = arith.constant 0 : index
    %2 = arith.index_cast %1 : i32 to index
    %c0_0 = arith.constant 0 : index
    %c0_1 = arith.constant 0 : index
    %3 = vector.load %arg2[%c0, %2, %c0_0, %c0_1] : memref<1x18x18x4xf32, #tpu.memory_space<vmem>>, vector<1x18x18x4xf32>
    %4 = vector.shape_cast %3 : vector<1x18x18x4xf32> to vector<18x18x4xf32>
    %5 = vector.extract_strided_slice %4 {offsets = [0, 0, 0], sizes = [18, 16, 4], strides = [1, 1, 1]} : vector<18x18x4xf32> to vector<18x16x4xf32>
    %6 = vector.extract_strided_slice %4 {offsets = [0, 1, 0], sizes = [18, 16, 4], strides = [1, 1, 1]} : vector<18x18x4xf32> to vector<18x16x4xf32>
    %7 = vector.extract_strided_slice %4 {offsets = [0, 2, 0], sizes = [18, 16, 4], strides = [1, 1, 1]} : vector<18x18x4xf32> to vector<18x16x4xf32>
    %8 = tpu.concatenate %5, %6, %7 in 2 : vector<18x16x4xf32>, vector<18x16x4xf32>, vector<18x16x4xf32> -> vector<18x16x12xf32>
    %9 = vector.shape_cast %8 : vector<18x16x12xf32> to vector<288x12xf32>
    %c0_2 = arith.constant 0 : index
    %c0_3 = arith.constant 0 : index
    %c0_4 = arith.constant 0 : index
    %10 = vector.load %arg4[%c0_2, %c0_3, %c0_4] : memref<1x1x8xf32, #tpu.memory_space<vmem>>, vector<1x1x8xf32>
    %11 = vector.extract_strided_slice %9 {offsets = [0, 0], sizes = [256, 12], strides = [1, 1]} : vector<288x12xf32> to vector<256x12xf32>
    %12 = vector.extract_strided_slice %9 {offsets = [16, 0], sizes = [256, 12], strides = [1, 1]} : vector<288x12xf32> to vector<256x12xf32>
    %13 = tpu.concatenate %11, %12 in 1 : vector<256x12xf32>, vector<256x12xf32> -> vector<256x24xf32>
    %c0_5 = arith.constant 0 : index
    %c0_6 = arith.constant 0 : index
    %c0_7 = arith.constant 0 : index
    %14 = vector.load %arg3[%c0_5, %c0_6, %c0_7] : memref<2x24x8xf32, #tpu.memory_space<vmem>>, vector<1x24x8xf32>
    %15 = vector.shape_cast %14 : vector<1x24x8xf32> to vector<24x8xf32>
    %cst = arith.constant dense<0.000000e+00> : vector<256x8xf32>
    %16 = tpu.matmul %13, %15, %cst {dimension_numbers = #tpu.dot_dimension_numbers<[1], [0], [0], [1], [0, 0, 1, 1], [], []>} : vector<256x24xf32>, vector<24x8xf32>, vector<256x8xf32> -> vector<256x8xf32>
    %17 = vector.shape_cast %16 : vector<256x8xf32> to vector<16x16x8xf32>
    %18 = vector.broadcast %10 : vector<1x1x8xf32> to vector<16x16x8xf32>
    %19 = arith.addf %17, %18 : vector<16x16x8xf32>
    %c0_8 = arith.constant 0 : index
    %c0_9 = arith.constant 0 : index
    %c0_10 = arith.constant 0 : index
    %c0_11 = arith.constant 0 : index
    %c0_12 = arith.constant 0 : index
    %20 = vector.load %arg5[%c0_8, %c0_9, %c0_10, %c0_11, %c0_12] : memref<1x16x2x16x8xf32, #tpu.memory_space<vmem>>, vector<1x16x1x16x8xf32>
    %21 = vector.shape_cast %20 : vector<1x16x1x16x8xf32> to vector<16x16x8xf32>
    %22 = vector.shape_cast %19 : vector<16x16x8xf32> to vector<1x16x1x16x8xf32>
    tpu.vector_store %arg5[%c0_8, %c0_9, %c0_10, %c0_11, %c0_12], %22 {strides = array<i32>} : memref<1x16x2x16x8xf32, #tpu.memory_space<vmem>>, vector<1x16x1x16x8xf32>,
    %23 = vector.extract_strided_slice %9 {offsets = [16, 0], sizes = [256, 12], strides = [1, 1]} : vector<288x12xf32> to vector<256x12xf32>
    %24 = vector.extract_strided_slice %9 {offsets = [32, 0], sizes = [256, 12], strides = [1, 1]} : vector<288x12xf32> to vector<256x12xf32>
    %25 = tpu.concatenate %23, %24 in 1 : vector<256x12xf32>, vector<256x12xf32> -> vector<256x24xf32>
    %c1 = arith.constant 1 : index
    %c0_13 = arith.constant 0 : index
    %c0_14 = arith.constant 0 : index
    %26 = vector.load %arg3[%c1, %c0_13, %c0_14] : memref<2x24x8xf32, #tpu.memory_space<vmem>>, vector<1x24x8xf32>
    %27 = vector.shape_cast %26 : vector<1x24x8xf32> to vector<24x8xf32>
    %cst_15 = arith.constant dense<0.000000e+00> : vector<256x8xf32>
    %28 = tpu.matmul %25, %27, %cst_15 {dimension_numbers = #tpu.dot_dimension_numbers<[1], [0], [0], [1], [0, 0, 1, 1], [], []>} : vector<256x24xf32>, vector<24x8xf32>, vector<256x8xf32> -> vector<256x8xf32>
    %29 = vector.shape_cast %28 : vector<256x8xf32> to vector<16x16x8xf32>
    %30 = vector.broadcast %10 : vector<1x1x8xf32> to vector<16x16x8xf32>
    %31 = arith.addf %29, %30 : vector<16x16x8xf32>
    %c0_16 = arith.constant 0 : index
    %c0_17 = arith.constant 0 : index
    %c1_18 = arith.constant 1 : index
    %c0_19 = arith.constant 0 : index
    %c0_20 = arith.constant 0 : index
    %32 = vector.load %arg5[%c0_16, %c0_17, %c1_18, %c0_19, %c0_20] : memref<1x16x2x16x8xf32, #tpu.memory_space<vmem>>, vector<1x16x1x16x8xf32>
    %33 = vector.shape_cast %32 : vector<1x16x1x16x8xf32> to vector<16x16x8xf32>
    %34 = vector.shape_cast %31 : vector<16x16x8xf32> to vector<1x16x1x16x8xf32>
    tpu.vector_store %arg5[%c0_16, %c0_17, %c1_18, %c0_19, %c0_20], %34 {strides = array<i32>} : memref<1x16x2x16x8xf32, #tpu.memory_space<vmem>>, vector<1x16x1x16x8xf32>,
    return
  }
  func.func @transform_0(%arg0: i32, %arg1: i32) -> (i32, i32, i32, i32) {
    %c0_i32 = arith.constant 0 : i32
    %c0_i32_0 = arith.constant 0 : i32
    %c0_i32_1 = arith.constant 0 : i32
    %c0_i32_2 = arith.constant 0 : i32
    return %arg0, %c0_i32, %c0_i32_0, %c0_i32_1 : i32, i32, i32, i32
  }
  func.func @transform_1(%arg0: i32, %arg1: i32) -> (i32, i32, i32) {
    %c0_i32 = arith.constant 0 : i32
    %c0_i32_0 = arith.constant 0 : i32
    %c0_i32_1 = arith.constant 0 : i32
    %c0_i32_2 = arith.constant 0 : i32
    return %c0_i32, %c0_i32_0, %c0_i32_1 : i32, i32, i32
  }
  func.func @transform_2(%arg0: i32, %arg1: i32) -> (i32, i32, i32) {
    %c0_i32 = arith.constant 0 : i32
    %c0_i32_0 = arith.constant 0 : i32
    %c0_i32_1 = arith.constant 0 : i32
    %c0_i32_2 = arith.constant 0 : i32
    return %c0_i32, %c0_i32_0, %c0_i32_1 : i32, i32, i32
  }
  func.func @transform_3(%arg0: i32, %arg1: i32) -> (i32, i32, i32, i32, i32) {
    %c0_i32 = arith.constant 0 : i32
    %c0_i32_0 = arith.constant 0 : i32
    %c0_i32_1 = arith.constant 0 : i32
    %c0_i32_2 = arith.constant 0 : i32
    return %arg0, %arg1, %c0_i32, %c0_i32_0, %c0_i32_1 : i32, i32, i32, i32, i32
  }
}

</mosaic_0001>

<llo_original>
// kernel: tpu_custom_call.1
$region0: #{tpu_custom_call.1}
  #allocation0 [shape = 'u32[]', space=smem, size = 0x4, offset = 0x4, fixed_abs, tag = 'smem constant byte address 0x4 - core index']
  #allocation1 [shape = 'u32[144,128]{1,0:T(1,128)}', space=vmem, size = 0x12000, scoped, tag = 'internal scratch']
  %s0 = inlined_call_operand.vmem [shape: f32[2,18,18,4], index: 0, kind: input, shape index: {}]
  %s1 = inlined_call_operand.vmem [shape: f32[2,24,8], index: 1, kind: input, shape index: {}]
  %s2 = inlined_call_operand.vmem [shape: f32[1,1,8], index: 2, kind: input, shape index: {}]
  %s3 = inlined_call_operand.vmem [shape: f32[2,16,2,16,8], index: 3, kind: output, shape index: {}]
  %s4 = sld [smem:[#allocation0]]
  $region45: #{tpu_custom_call.1} parent=0
    _
  %s6 = ssub.s32 1, %s4
  %s7 = scalar_select 0, %s6, %s4
  loop: start=0, step=1, limit=4
  $region2: #{tpu_custom_call.1} parent=0 // loop_pre_header
    _
  $region3: #{tpu_custom_call.1} parent=0 // loop_header
    %s9 = sphi 0, %s13
    %p10 = scmp.ge.s32.totalorder %s9, 4
    %s16 = sphi 0, %s28
    %s17 = sphi 0, %s24
    %s18 = sphi 0, %s16
    %s19 = sphi 0, %s17
    %s20 = sphi 0, %s18
    %s21 = sphi 0, %s19
    %s31 = sphi 0, %s33
    %s34 = sphi 0, %s31
    %s35 = sphi 0, %s34
    %s51 = sphi 0, %s35
    %s55 = sphi 0, %s55
    %s57 = sphi 0, %s55
    %s58 = sphi 0, %s57
    %s72 = sphi 0, %s58
    %s76 = sphi 0, %s76
    %s78 = sphi 0, %s76
    %s79 = sphi 0, %s78
    %s93 = sphi 0, %s79
    %s101 = sphi 0, %s103
    %s104 = sphi 0, %s101
    %s105 = sphi 0, %s104
    %s121 = sphi 0, %s105
  $region4: #{tpu_custom_call.1} parent=0 // loop_header_branch
    %12 = sbr.rel (%p10) target = $region8
  $region5: #{tpu_custom_call.1} parent=0 // loop_body
    %s14 = ssub.s32 %s9, 1
    %s15 = ssub.s32 %s9, 2
    %s22 = sadd.s32 1, %s17
    %p23 = scmp.ge.s32.totalorder %s22, 1
    %s24 = scalar_select %p23, 0, %s22
    %s25 = sadd.s32 1, %s16
    %s26 = scalar_select %p23, %s25, %s16
    %p27 = scmp.ge.s32.totalorder %s26, 2
    %s28 = scalar_select %p27, 0, %s26
    %s29 = ssub.s32 %s16, %s28
    %p30 = scmp.eq.s32.totalorder %s29, 0
    %s32 = sadd.s32 %s31, 1
    %s33 = scalar_select %p30, %s31, %s32
    %p36 = pneg %p30
    %p37 = scmp.eq.s32.totalorder %s9, 1
    %p38 = por %p36, %p37
    %p39 = scmp.ne.s32.totalorder %s31, %s34
    %p40 = scmp.eq.s32.totalorder %s9, 0
    %p41 = por %p39, %p40
    %p42 = scmp.ne.s32.totalorder %s31, %s34
    %p43 = scmp.eq.s32.totalorder %s14, 1
    %p44 = por %p42, %p43
    %p45 = scmp.ne.s32.totalorder %s34, %s35
    %p46 = scmp.eq.s32.totalorder %s14, 0
    %p47 = por %p45, %p46
    %p48 = scmp.ne.s32.totalorder %s34, %s35
    %p49 = scmp.eq.s32.totalorder %s15, 1
    %p50 = por %p48, %p49
    %p52 = scmp.ne.s32.totalorder %s35, %s51
    %p53 = scmp.eq.s32.totalorder %s15, 0
    %p54 = por %p52, %p53
    %s56 = sadd.s32 %s55, 1
    %p59 = scmp.eq.s32.totalorder %s9, 1
    %p60 = scmp.ne.s32.totalorder %s55, %s57
    %p61 = scmp.eq.s32.totalorder %s9, 0
    %p62 = por %p60, %p61
    %p63 = scmp.ne.s32.totalorder %s55, %s57
    %p64 = scmp.eq.s32.totalorder %s14, 1
    %p65 = por %p63, %p64
    %p66 = scmp.ne.s32.totalorder %s57, %s58
    %p67 = scmp.eq.s32.totalorder %s14, 0
    %p68 = por %p66, %p67
    %p69 = scmp.ne.s32.totalorder %s57, %s58
    %p70 = scmp.eq.s32.totalorder %s15, 1
    %p71 = por %p69, %p70
    %p73 = scmp.ne.s32.totalorder %s58, %s72
    %p74 = scmp.eq.s32.totalorder %s15, 0
    %p75 = por %p73, %p74
    %s77 = sadd.s32 %s76, 1
    %p80 = scmp.eq.s32.totalorder %s9, 1
    %p81 = scmp.ne.s32.totalorder %s76, %s78
    %p82 = scmp.eq.s32.totalorder %s9, 0
    %p83 = por %p81, %p82
    %p84 = scmp.ne.s32.totalorder %s76, %s78
    %p85 = scmp.eq.s32.totalorder %s14, 1
    %p86 = por %p84, %p85
    %p87 = scmp.ne.s32.totalorder %s78, %s79
    %p88 = scmp.eq.s32.totalorder %s14, 0
    %p89 = por %p87, %p88
    %p90 = scmp.ne.s32.totalorder %s78, %s79
    %p91 = scmp.eq.s32.totalorder %s15, 1
    %p92 = por %p90, %p91
    %p94 = scmp.ne.s32.totalorder %s79, %s93
    %p95 = scmp.eq.s32.totalorder %s15, 0
    %p96 = por %p94, %p95
    %s97 = ssub.s32 %s16, %s28
    %s98 = ssub.s32 %s17, %s24
    %s99 = sor.u32 %s97, %s98
    %p100 = scmp.eq.s32.totalorder %s99, 0
    %s102 = sadd.s32 %s101, 1
    %s103 = scalar_select %p100, %s101, %s102
    %p106 = pneg %p100
    %p107 = scmp.eq.s32.totalorder %s9, 1
    %p108 = por %p106, %p107
    %p109 = scmp.ne.s32.totalorder %s101, %s104
    %p110 = scmp.eq.s32.totalorder %s9, 0
    %p111 = por %p109, %p110
    %p112 = scmp.ne.s32.totalorder %s101, %s104
    %p113 = scmp.eq.s32.totalorder %s14, 1
    %p114 = por %p112, %p113
    %p115 = scmp.ne.s32.totalorder %s104, %s105
    %p116 = scmp.eq.s32.totalorder %s14, 0
    %p117 = por %p115, %p116
    %p118 = scmp.ne.s32.totalorder %s104, %s105
    %p119 = scmp.eq.s32.totalorder %s15, 1
    %p120 = por %p118, %p119
    %p122 = scmp.ne.s32.totalorder %s105, %s121
    %p123 = scmp.eq.s32.totalorder %s15, 0
    %p124 = por %p122, %p123
    %p125 = scmp.le.s32.totalorder 1, %s9
    %p126 = scmp.lt.s32.totalorder %s9, 3
    %p127 = pnand %p125, %p126
    %p128 = pneg %p127
    // Predicated region
    $region9: #{tpu_custom_call.1} parent=5 // pred_check
      _
    $region10: #{tpu_custom_call.1} parent=5 // pred_check_branch
      %130 = sbr.rel (%p127) target = $region12
    $region11: #{tpu_custom_call.1} parent=5 // pred_region
      %s131 = ssub.s32 %s9, 1
      // Predicated region
      $region13: #{tpu_custom_call.1} parent=11 // pred_check
        %p132 = pneg %p68
      $region14: #{tpu_custom_call.1} parent=11 // pred_check_branch
        %134 = sbr.rel (%p132) target = $region16
      $region15: #{tpu_custom_call.1} parent=11 // pred_region
        _
      $region16: #{tpu_custom_call.1} parent=11 // pred_fallthru
        _
      // Predicated region
      $region17: #{tpu_custom_call.1} parent=11 // pred_check
        %p135 = pneg %p89
      $region18: #{tpu_custom_call.1} parent=11 // pred_check_branch
        %137 = sbr.rel (%p135) target = $region20
      $region19: #{tpu_custom_call.1} parent=11 // pred_region
        _
      $region20: #{tpu_custom_call.1} parent=11 // pred_fallthru
        _
    $region12: #{tpu_custom_call.1} parent=5 // pred_fallthru
      _
    %p138 = scmp.lt.s32.totalorder %s9, 2
    // Predicated region
    $region21: #{tpu_custom_call.1} parent=5 // pred_check
      %p139 = pneg %p138
    $region22: #{tpu_custom_call.1} parent=5 // pred_check_branch
      %141 = sbr.rel (%p139) target = $region24
    $region23: #{tpu_custom_call.1} parent=5 // pred_region
      // Predicated region
      $region25: #{tpu_custom_call.1} parent=23 // pred_check
        %p142 = pneg %p41
      $region26: #{tpu_custom_call.1} parent=23 // pred_check_branch
        %144 = sbr.rel (%p142) target = $region28
      $region27: #{tpu_custom_call.1} parent=23 // pred_region
        %p145 = scmp.lt.s32.totalorder %s16, 1
        %s146 = scalar_select %p145, %s16, 1
        %s147 = smul.addr %s146, 54
        %s148 = smul.addr %s147, 8
        %s149 = scalar_lea.vmem %s0, %s148
      $region28: #{tpu_custom_call.1} parent=23 // pred_fallthru
        _
    $region24: #{tpu_custom_call.1} parent=5 // pred_fallthru
      _
    %p150 = scmp.le.s32.totalorder 1, %s9
    %p151 = scmp.lt.s32.totalorder %s9, 3
    %p152 = pnand %p150, %p151
    %p153 = pneg %p152
    // Predicated region
    $region29: #{tpu_custom_call.1} parent=5 // pred_check
      _
    $region30: #{tpu_custom_call.1} parent=5 // pred_check_branch
      %155 = sbr.rel (%p152) target = $region32
    $region31: #{tpu_custom_call.1} parent=5 // pred_region
      %s156 = ssub.s32 %s9, 1
      %p157 = scmp.lt.s32.totalorder %s18, 1
      %s158 = scalar_select %p157, %s18, 1
      %s159 = smul.addr %s158, 54
      %s160 = smul.addr %s159, 8
      %s161 = scalar_lea.vmem %s0, %s160
      %p162 = pneg %p47
      %p163 = pneg %p44
      %p164 = pneg %p68
      %p165 = pneg %p65
      %p166 = pneg %p89
      %p167 = pneg %p86
      %p168 = pneg %p117
      %p169 = pneg %p114
      %s170 = smul.u32 16, %s19
      %p171 = scmp.lt.s32.totalorder %s18, 1
      %s172 = scalar_select %p171, %s18, 1
      %p173 = scmp.lt.s32.totalorder %s170, 15
      %s174 = scalar_select %p173, %s170, 15
      %s175 = smul.addr %s174, 4
      %s176 = smul.addr %s172, 64
      %s177 = sadd.s32 %s175, %s176
      %s178 = smul.addr %s177, 8
      %s179 = scalar_lea.vmem %s3, %s178
      %p180 = scmp.lt.s32.totalorder %s18, 1
      %s181 = scalar_select %p180, %s18, 1
      %s182 = smul.addr %s181, 54
      %s183 = smul.addr %s182, 8
      %s184 = scalar_lea.vmem %s0, %s183
      %s185 = smul.u32 16, %s19
      %p186 = scmp.lt.s32.totalorder %s18, 1
      %s187 = scalar_select %p186, %s18, 1
      %p188 = scmp.lt.s32.totalorder %s185, 15
      %s189 = scalar_select %p188, %s185, 15
      %s190 = smul.addr %s189, 4
      %s191 = smul.addr %s187, 64
      %s192 = sadd.s32 %s190, %s191
      %s193 = smul.addr %s192, 8
      %s194 = scalar_lea.vmem %s3, %s193
      %s195 = smul.u32 16, %s19
      %s196 = smul.u32 %s19, 16
      %s197 = smul.u32 %s196, 24
      %s198 = scalar_lea.vmem %s184, %s197
      %v199 = vld [vmem:[%s198] sm:$0xff]
      %v200 = vld [vmem:[%s198 + $0x8] sm:$0xff]
      %v201 = vld [vmem:[%s198 + $0x10] sm:$0x3]
      %v202 = vld [vmem:[%s198 + $0x18] sm:$0xff]
      %v203 = vld [vmem:[%s198 + $0x20] sm:$0xff]
      %v204 = vld [vmem:[%s198 + $0x28] sm:$0x3]
      %v205 = vld [vmem:[%s198 + $0x30] sm:$0xff]
      %v206 = vld [vmem:[%s198 + $0x38] sm:$0xff]
      %v207 = vld [vmem:[%s198 + $0x40] sm:$0x3]
      %v208 = vld [vmem:[%s198 + $0x48] sm:$0xff]
      %v209 = vld [vmem:[%s198 + $0x50] sm:$0xff]
      %v210 = vld [vmem:[%s198 + $0x58] sm:$0x3]
      %v211 = vld [vmem:[%s198 + $0x60] sm:$0xff]
      %v212 = vld [vmem:[%s198 + $0x68] sm:$0xff]
      %v213 = vld [vmem:[%s198 + $0x70] sm:$0x3]
      %v214 = vld [vmem:[%s198 + $0x78] sm:$0xff]
      %v215 = vld [vmem:[%s198 + $0x80] sm:$0xff]
      %v216 = vld [vmem:[%s198 + $0x88] sm:$0x3]
      %v217 = vld [vmem:[%s198 + $0x90] sm:$0xff]
      %v218 = vld [vmem:[%s198 + $0x98] sm:$0xff]
      %v219 = vld [vmem:[%s198 + $0xa0] sm:$0x3]
      %v220 = vld [vmem:[%s198 + $0xa8] sm:$0xff]
      %v221 = vld [vmem:[%s198 + $0xb0] sm:$0xff]
      %v222 = vld [vmem:[%s198 + $0xb8] sm:$0x3]
      %v223 = vld [vmem:[%s198 + $0xc0] sm:$0xff]
      %v224 = vld [vmem:[%s198 + $0xc8] sm:$0xff]
      %v225 = vld [vmem:[%s198 + $0xd0] sm:$0x3]
      %v226 = vld [vmem:[%s198 + $0xd8] sm:$0xff]
      %v227 = vld [vmem:[%s198 + $0xe0] sm:$0xff]
      %v228 = vld [vmem:[%s198 + $0xe8] sm:$0x3]
      %v229 = vld [vmem:[%s198 + $0xf0] sm:$0xff]
      %v230 = vld [vmem:[%s198 + $0xf8] sm:$0xff]
      %v231 = vld [vmem:[%s198 + $0x100] sm:$0x3]
      %v232 = vld [vmem:[%s198 + $0x108] sm:$0xff]
      %v233 = vld [vmem:[%s198 + $0x110] sm:$0xff]
      %v234 = vld [vmem:[%s198 + $0x118] sm:$0x3]
      %v235 = vld [vmem:[%s198 + $0x120] sm:$0xff]
      %v236 = vld [vmem:[%s198 + $0x128] sm:$0xff]
      %v237 = vld [vmem:[%s198 + $0x130] sm:$0x3]
      %v238 = vld [vmem:[%s198 + $0x138] sm:$0xff]
      %v239 = vld [vmem:[%s198 + $0x140] sm:$0xff]
      %v240 = vld [vmem:[%s198 + $0x148] sm:$0x3]
      %v241 = vld [vmem:[%s198 + $0x150] sm:$0xff]
      %v242 = vld [vmem:[%s198 + $0x158] sm:$0xff]
      %v243 = vld [vmem:[%s198 + $0x160] sm:$0x3]
      %v244 = vld [vmem:[%s198 + $0x168] sm:$0xff]
      %v245 = vld [vmem:[%s198 + $0x170] sm:$0xff]
      %v246 = vld [vmem:[%s198 + $0x178] sm:$0x3]
      %v247 = vld [vmem:[%s198 + $0x180] sm:$0xff]
      %v248 = vld [vmem:[%s198 + $0x188] sm:$0xff]
      %v249 = vld [vmem:[%s198 + $0x190] sm:$0x3]
      %v250 = vld [vmem:[%s198 + $0x198] sm:$0xff]
      %v251 = vld [vmem:[%s198 + $0x1a0] sm:$0xff]
      %v252 = vld [vmem:[%s198 + $0x1a8] sm:$0x3]
      %vm307 = vcmask 1046528
      %v308 = vrot.slane %v199, 1
      %v309 = vrot.slane %v200, 1
      %v310 = vsel %vm307, %v308, %v309
      %v311 = vrot.slane %v201, 1
      %v312 = vsel %vm307, %v309, %v311
      %v313 = vrot.slane %v202, 1
      %v314 = vrot.slane %v203, 1
      %v315 = vsel %vm307, %v313, %v314
      %v316 = vrot.slane %v204, 1
      %v317 = vsel %vm307, %v314, %v316
      %v318 = vrot.slane %v205, 1
      %v319 = vrot.slane %v206, 1
      %v320 = vsel %vm307, %v318, %v319
      %v321 = vrot.slane %v207, 1
      %v322 = vsel %vm307, %v319, %v321
      %v323 = vrot.slane %v208, 1
      %v324 = vrot.slane %v209, 1
      %v325 = vsel %vm307, %v323, %v324
      %v326 = vrot.slane %v210, 1
      %v327 = vsel %vm307, %v324, %v326
      %v328 = vrot.slane %v211, 1
      %v329 = vrot.slane %v212, 1
      %v330 = vsel %vm307, %v328, %v329
      %v331 = vrot.slane %v213, 1
      %v332 = vsel %vm307, %v329, %v331
      %v333 = vrot.slane %v214, 1
      %v334 = vrot.slane %v215, 1
      %v335 = vsel %vm307, %v333, %v334
      %v336 = vrot.slane %v216, 1
      %v337 = vsel %vm307, %v334, %v336
      %v338 = vrot.slane %v217, 1
      %v339 = vrot.slane %v218, 1
      %v340 = vsel %vm307, %v338, %v339
      %v341 = vrot.slane %v219, 1
      %v342 = vsel %vm307, %v339, %v341
      %v343 = vrot.slane %v220, 1
      %v344 = vrot.slane %v221, 1
      %v345 = vsel %vm307, %v343, %v344
      %v346 = vrot.slane %v222, 1
      %v347 = vsel %vm307, %v344, %v346
      %v348 = vrot.slane %v223, 1
      %v349 = vrot.slane %v224, 1
      %v350 = vsel %vm307, %v348, %v349
      %v351 = vrot.slane %v225, 1
      %v352 = vsel %vm307, %v349, %v351
      %v353 = vrot.slane %v226, 1
      %v354 = vrot.slane %v227, 1
      %v355 = vsel %vm307, %v353, %v354
      %v356 = vrot.slane %v228, 1
      %v357 = vsel %vm307, %v354, %v356
      %v358 = vrot.slane %v229, 1
      %v359 = vrot.slane %v230, 1
      %v360 = vsel %vm307, %v358, %v359
      %v361 = vrot.slane %v231, 1
      %v362 = vsel %vm307, %v359, %v361
      %v363 = vrot.slane %v232, 1
      %v364 = vrot.slane %v233, 1
      %v365 = vsel %vm307, %v363, %v364
      %v366 = vrot.slane %v234, 1
      %v367 = vsel %vm307, %v364, %v366
      %v368 = vrot.slane %v235, 1
      %v369 = vrot.slane %v236, 1
      %v370 = vsel %vm307, %v368, %v369
      %v371 = vrot.slane %v237, 1
      %v372 = vsel %vm307, %v369, %v371
      %v373 = vrot.slane %v238, 1
      %v374 = vrot.slane %v239, 1
      %v375 = vsel %vm307, %v373, %v374
      %v376 = vrot.slane %v240, 1
      %v377 = vsel %vm307, %v374, %v376
      %v378 = vrot.slane %v241, 1
      %v379 = vrot.slane %v242, 1
      %v380 = vsel %vm307, %v378, %v379
      %v381 = vrot.slane %v243, 1
      %v382 = vsel %vm307, %v379, %v381
      %v383 = vrot.slane %v244, 1
      %v384 = vrot.slane %v245, 1
      %v385 = vsel %vm307, %v383, %v384
      %v386 = vrot.slane %v246, 1
      %v387 = vsel %vm307, %v384, %v386
      %v388 = vrot.slane %v247, 1
      %v389 = vrot.slane %v248, 1
      %v390 = vsel %vm307, %v388, %v389
      %v391 = vrot.slane %v249, 1
      %v392 = vsel %vm307, %v389, %v391
      %v393 = vrot.slane %v250, 1
      %v394 = vrot.slane %v251, 1
      %v395 = vsel %vm307, %v393, %v394
      %v396 = vrot.slane %v252, 1
      %v397 = vsel %vm307, %v394, %v396
      %398 = vrot.lane.b32.xlu0 %v310, 4
      %v399 = vpop.permute.xlu0 %398
      %400 = vrot.lane.b32.xlu0 %v312, 4
      %v401 = vpop.permute.xlu0 %400
      %402 = vrot.lane.b32.xlu0 %v315, 4
      %v403 = vpop.permute.xlu0 %402
      %404 = vrot.lane.b32.xlu0 %v317, 4
      %v405 = vpop.permute.xlu0 %404
      %406 = vrot.lane.b32.xlu0 %v320, 4
      %v407 = vpop.permute.xlu0 %406
      %408 = vrot.lane.b32.xlu0 %v322, 4
      %v409 = vpop.permute.xlu0 %408
      %410 = vrot.lane.b32.xlu0 %v325, 4
      %v411 = vpop.permute.xlu0 %410
      %412 = vrot.lane.b32.xlu0 %v327, 4
      %v413 = vpop.permute.xlu0 %412
      %414 = vrot.lane.b32.xlu0 %v330, 4
      %v415 = vpop.permute.xlu0 %414
      %416 = vrot.lane.b32.xlu0 %v332, 4
      %v417 = vpop.permute.xlu0 %416
      %418 = vrot.lane.b32.xlu0 %v335, 4
      %v419 = vpop.permute.xlu0 %418
      %420 = vrot.lane.b32.xlu0 %v337, 4
      %v421 = vpop.permute.xlu0 %420
      %422 = vrot.lane.b32.xlu0 %v340, 4
      %v423 = vpop.permute.xlu0 %422
      %424 = vrot.lane.b32.xlu0 %v342, 4
      %v425 = vpop.permute.xlu0 %424
      %426 = vrot.lane.b32.xlu0 %v345, 4
      %v427 = vpop.permute.xlu0 %426
      %428 = vrot.lane.b32.xlu0 %v347, 4
      %v429 = vpop.permute.xlu0 %428
      %430 = vrot.lane.b32.xlu0 %v350, 4
      %v431 = vpop.permute.xlu0 %430
      %432 = vrot.lane.b32.xlu0 %v352, 4
      %v433 = vpop.permute.xlu0 %432
      %434 = vrot.lane.b32.xlu0 %v355, 4
      %v435 = vpop.permute.xlu0 %434
      %436 = vrot.lane.b32.xlu0 %v357, 4
      %v437 = vpop.permute.xlu0 %436
      %438 = vrot.lane.b32.xlu0 %v360, 4
      %v439 = vpop.permute.xlu0 %438
      %440 = vrot.lane.b32.xlu0 %v362, 4
      %v441 = vpop.permute.xlu0 %440
      %442 = vrot.lane.b32.xlu0 %v365, 4
      %v443 = vpop.permute.xlu0 %442
      %444 = vrot.lane.b32.xlu0 %v367, 4
      %v445 = vpop.permute.xlu0 %444
      %446 = vrot.lane.b32.xlu0 %v370, 4
      %v447 = vpop.permute.xlu0 %446
      %448 = vrot.lane.b32.xlu0 %v372, 4
      %v449 = vpop.permute.xlu0 %448
      %450 = vrot.lane.b32.xlu0 %v375, 4
      %v451 = vpop.permute.xlu0 %450
      %452 = vrot.lane.b32.xlu0 %v377, 4
      %v453 = vpop.permute.xlu0 %452
      %454 = vrot.lane.b32.xlu0 %v380, 4
      %v455 = vpop.permute.xlu0 %454
      %456 = vrot.lane.b32.xlu0 %v382, 4
      %v457 = vpop.permute.xlu0 %456
      %458 = vrot.lane.b32.xlu0 %v385, 4
      %v459 = vpop.permute.xlu0 %458
      %460 = vrot.lane.b32.xlu0 %v387, 4
      %v461 = vpop.permute.xlu0 %460
      %462 = vrot.lane.b32.xlu0 %v390, 4
      %v463 = vpop.permute.xlu0 %462
      %464 = vrot.lane.b32.xlu0 %v392, 4
      %v465 = vpop.permute.xlu0 %464
      %466 = vrot.lane.b32.xlu0 %v395, 4
      %v467 = vpop.permute.xlu0 %466
      %468 = vrot.lane.b32.xlu0 %v397, 4
      %v469 = vpop.permute.xlu0 %468
      %vm506 = vcmask 1045504
      %v507 = vrot.slane %v199, 2
      %v508 = vrot.slane %v200, 2
      %v509 = vsel %vm506, %v507, %v508
      %v510 = vrot.slane %v201, 2
      %v511 = vsel %vm506, %v508, %v510
      %v512 = vrot.slane %v202, 2
      %v513 = vrot.slane %v203, 2
      %v514 = vsel %vm506, %v512, %v513
      %v515 = vrot.slane %v204, 2
      %v516 = vsel %vm506, %v513, %v515
      %v517 = vrot.slane %v205, 2
      %v518 = vrot.slane %v206, 2
      %v519 = vsel %vm506, %v517, %v518
      %v520 = vrot.slane %v207, 2
      %v521 = vsel %vm506, %v518, %v520
      %v522 = vrot.slane %v208, 2
      %v523 = vrot.slane %v209, 2
      %v524 = vsel %vm506, %v522, %v523
      %v525 = vrot.slane %v210, 2
      %v526 = vsel %vm506, %v523, %v525
      %v527 = vrot.slane %v211, 2
      %v528 = vrot.slane %v212, 2
      %v529 = vsel %vm506, %v527, %v528
      %v530 = vrot.slane %v213, 2
      %v531 = vsel %vm506, %v528, %v530
      %v532 = vrot.slane %v214, 2
      %v533 = vrot.slane %v215, 2
      %v534 = vsel %vm506, %v532, %v533
      %v535 = vrot.slane %v216, 2
      %v536 = vsel %vm506, %v533, %v535
      %v537 = vrot.slane %v217, 2
      %v538 = vrot.slane %v218, 2
      %v539 = vsel %vm506, %v537, %v538
      %v540 = vrot.slane %v219, 2
      %v541 = vsel %vm506, %v538, %v540
      %v542 = vrot.slane %v220, 2
      %v543 = vrot.slane %v221, 2
      %v544 = vsel %vm506, %v542, %v543
      %v545 = vrot.slane %v222, 2
      %v546 = vsel %vm506, %v543, %v545
      %v547 = vrot.slane %v223, 2
      %v548 = vrot.slane %v224, 2
      %v549 = vsel %vm506, %v547, %v548
      %v550 = vrot.slane %v225, 2
      %v551 = vsel %vm506, %v548, %v550
      %v552 = vrot.slane %v226, 2
      %v553 = vrot.slane %v227, 2
      %v554 = vsel %vm506, %v552, %v553
      %v555 = vrot.slane %v228, 2
      %v556 = vsel %vm506, %v553, %v555
      %v557 = vrot.slane %v229, 2
      %v558 = vrot.slane %v230, 2
      %v559 = vsel %vm506, %v557, %v558
      %v560 = vrot.slane %v231, 2
      %v561 = vsel %vm506, %v558, %v560
      %v562 = vrot.slane %v232, 2
      %v563 = vrot.slane %v233, 2
      %v564 = vsel %vm506, %v562, %v563
      %v565 = vrot.slane %v234, 2
      %v566 = vsel %vm506, %v563, %v565
      %v567 = vrot.slane %v235, 2
      %v568 = vrot.slane %v236, 2
      %v569 = vsel %vm506, %v567, %v568
      %v570 = vrot.slane %v237, 2
      %v571 = vsel %vm506, %v568, %v570
      %v572 = vrot.slane %v238, 2
      %v573 = vrot.slane %v239, 2
      %v574 = vsel %vm506, %v572, %v573
      %v575 = vrot.slane %v240, 2
      %v576 = vsel %vm506, %v573, %v575
      %v577 = vrot.slane %v241, 2
      %v578 = vrot.slane %v242, 2
      %v579 = vsel %vm506, %v577, %v578
      %v580 = vrot.slane %v243, 2
      %v581 = vsel %vm506, %v578, %v580
      %v582 = vrot.slane %v244, 2
      %v583 = vrot.slane %v245, 2
      %v584 = vsel %vm506, %v582, %v583
      %v585 = vrot.slane %v246, 2
      %v586 = vsel %vm506, %v583, %v585
      %v587 = vrot.slane %v247, 2
      %v588 = vrot.slane %v248, 2
      %v589 = vsel %vm506, %v587, %v588
      %v590 = vrot.slane %v249, 2
      %v591 = vsel %vm506, %v588, %v590
      %v592 = vrot.slane %v250, 2
      %v593 = vrot.slane %v251, 2
      %v594 = vsel %vm506, %v592, %v593
      %v595 = vrot.slane %v252, 2
      %v596 = vsel %vm506, %v593, %v595
      %597 = vrot.lane.b32.xlu0 %v509, 8
      %v598 = vpop.permute.xlu0 %597
      %599 = vrot.lane.b32.xlu0 %v511, 8
      %v600 = vpop.permute.xlu0 %599
      %601 = vrot.lane.b32.xlu0 %v514, 8
      %v602 = vpop.permute.xlu0 %601
      %603 = vrot.lane.b32.xlu0 %v516, 8
      %v604 = vpop.permute.xlu0 %603
      %605 = vrot.lane.b32.xlu0 %v519, 8
      %v606 = vpop.permute.xlu0 %605
      %607 = vrot.lane.b32.xlu0 %v521, 8
      %v608 = vpop.permute.xlu0 %607
      %609 = vrot.lane.b32.xlu0 %v524, 8
      %v610 = vpop.permute.xlu0 %609
      %611 = vrot.lane.b32.xlu0 %v526, 8
      %v612 = vpop.permute.xlu0 %611
      %613 = vrot.lane.b32.xlu0 %v529, 8
      %v614 = vpop.permute.xlu0 %613
      %615 = vrot.lane.b32.xlu0 %v531, 8
      %v616 = vpop.permute.xlu0 %615
      %617 = vrot.lane.b32.xlu0 %v534, 8
      %v618 = vpop.permute.xlu0 %617
      %619 = vrot.lane.b32.xlu0 %v536, 8
      %v620 = vpop.permute.xlu0 %619
      %621 = vrot.lane.b32.xlu0 %v539, 8
      %v622 = vpop.permute.xlu0 %621
      %623 = vrot.lane.b32.xlu0 %v541, 8
      %v624 = vpop.permute.xlu0 %623
      %625 = vrot.lane.b32.xlu0 %v544, 8
      %v626 = vpop.permute.xlu0 %625
      %627 = vrot.lane.b32.xlu0 %v546, 8
      %v628 = vpop.permute.xlu0 %627
      %629 = vrot.lane.b32.xlu0 %v549, 8
      %v630 = vpop.permute.xlu0 %629
      %631 = vrot.lane.b32.xlu0 %v551, 8
      %v632 = vpop.permute.xlu0 %631
      %633 = vrot.lane.b32.xlu0 %v554, 8
      %v634 = vpop.permute.xlu0 %633
      %635 = vrot.lane.b32.xlu0 %v556, 8
      %v636 = vpop.permute.xlu0 %635
      %637 = vrot.lane.b32.xlu0 %v559, 8
      %v638 = vpop.permute.xlu0 %637
      %639 = vrot.lane.b32.xlu0 %v561, 8
      %v640 = vpop.permute.xlu0 %639
      %641 = vrot.lane.b32.xlu0 %v564, 8
      %v642 = vpop.permute.xlu0 %641
      %643 = vrot.lane.b32.xlu0 %v566, 8
      %v644 = vpop.permute.xlu0 %643
      %645 = vrot.lane.b32.xlu0 %v569, 8
      %v646 = vpop.permute.xlu0 %645
      %647 = vrot.lane.b32.xlu0 %v571, 8
      %v648 = vpop.permute.xlu0 %647
      %649 = vrot.lane.b32.xlu0 %v574, 8
      %v650 = vpop.permute.xlu0 %649
      %651 = vrot.lane.b32.xlu0 %v576, 8
      %v652 = vpop.permute.xlu0 %651
      %653 = vrot.lane.b32.xlu0 %v579, 8
      %v654 = vpop.permute.xlu0 %653
      %655 = vrot.lane.b32.xlu0 %v581, 8
      %v656 = vpop.permute.xlu0 %655
      %657 = vrot.lane.b32.xlu0 %v584, 8
      %v658 = vpop.permute.xlu0 %657
      %659 = vrot.lane.b32.xlu0 %v586, 8
      %v660 = vpop.permute.xlu0 %659
      %661 = vrot.lane.b32.xlu0 %v589, 8
      %v662 = vpop.permute.xlu0 %661
      %663 = vrot.lane.b32.xlu0 %v591, 8
      %v664 = vpop.permute.xlu0 %663
      %665 = vrot.lane.b32.xlu0 %v594, 8
      %v666 = vpop.permute.xlu0 %665
      %667 = vrot.lane.b32.xlu0 %v596, 8
      %v668 = vpop.permute.xlu0 %667
      %vm705 = vcmask 31744
      %v706 = vsel %vm705, %v199, %v399
      %v707 = vsel %vm705, %v200, %v401
      %v708 = vsel %vm705, %v202, %v403
      %v709 = vsel %vm705, %v203, %v405
      %v710 = vsel %vm705, %v205, %v407
      %v711 = vsel %vm705, %v206, %v409
      %v712 = vsel %vm705, %v208, %v411
      %v713 = vsel %vm705, %v209, %v413
      %v714 = vsel %vm705, %v211, %v415
      %v715 = vsel %vm705, %v212, %v417
      %v716 = vsel %vm705, %v214, %v419
      %v717 = vsel %vm705, %v215, %v421
      %v718 = vsel %vm705, %v217, %v423
      %v719 = vsel %vm705, %v218, %v425
      %v720 = vsel %vm705, %v220, %v427
      %v721 = vsel %vm705, %v221, %v429
      %v722 = vsel %vm705, %v223, %v431
      %v723 = vsel %vm705, %v224, %v433
      %v724 = vsel %vm705, %v226, %v435
      %v725 = vsel %vm705, %v227, %v437
      %v726 = vsel %vm705, %v229, %v439
      %v727 = vsel %vm705, %v230, %v441
      %v728 = vsel %vm705, %v232, %v443
      %v729 = vsel %vm705, %v233, %v445
      %v730 = vsel %vm705, %v235, %v447
      %v731 = vsel %vm705, %v236, %v449
      %v732 = vsel %vm705, %v238, %v451
      %v733 = vsel %vm705, %v239, %v453
      %v734 = vsel %vm705, %v241, %v455
      %v735 = vsel %vm705, %v242, %v457
      %v736 = vsel %vm705, %v244, %v459
      %v737 = vsel %vm705, %v245, %v461
      %v738 = vsel %vm705, %v247, %v463
      %v739 = vsel %vm705, %v248, %v465
      %v740 = vsel %vm705, %v250, %v467
      %v741 = vsel %vm705, %v251, %v469
      %vm742 = vcmask 64512
      %v743 = vsel %vm742, %v706, %v598
      %v744 = vsel %vm742, %v707, %v600
      %v745 = vsel %vm742, %v708, %v602
      %v746 = vsel %vm742, %v709, %v604
      %v747 = vsel %vm742, %v710, %v606
      %v748 = vsel %vm742, %v711, %v608
      %v749 = vsel %vm742, %v712, %v610
      %v750 = vsel %vm742, %v713, %v612
      %v751 = vsel %vm742, %v714, %v614
      %v752 = vsel %vm742, %v715, %v616
      %v753 = vsel %vm742, %v716, %v618
      %v754 = vsel %vm742, %v717, %v620
      %v755 = vsel %vm742, %v718, %v622
      %v756 = vsel %vm742, %v719, %v624
      %v757 = vsel %vm742, %v720, %v626
      %v758 = vsel %vm742, %v721, %v628
      %v759 = vsel %vm742, %v722, %v630
      %v760 = vsel %vm742, %v723, %v632
      %v761 = vsel %vm742, %v724, %v634
      %v762 = vsel %vm742, %v725, %v636
      %v763 = vsel %vm742, %v726, %v638
      %v764 = vsel %vm742, %v727, %v640
      %v765 = vsel %vm742, %v728, %v642
      %v766 = vsel %vm742, %v729, %v644
      %v767 = vsel %vm742, %v730, %v646
      %v768 = vsel %vm742, %v731, %v648
      %v769 = vsel %vm742, %v732, %v650
      %v770 = vsel %vm742, %v733, %v652
      %v771 = vsel %vm742, %v734, %v654
      %v772 = vsel %vm742, %v735, %v656
      %v773 = vsel %vm742, %v736, %v658
      %v774 = vsel %vm742, %v737, %v660
      %v775 = vsel %vm742, %v738, %v662
      %v776 = vsel %vm742, %v739, %v664
      %v777 = vsel %vm742, %v740, %v666
      %v778 = vsel %vm742, %v741, %v668
      %v779 = vld [vmem:[%s2] sm:$0x1]
      %812 = vrot.lane.b32.xlu0 %v745, 12
      %v813 = vpop.permute.xlu0 %812
      %814 = vrot.lane.b32.xlu0 %v746, 12
      %v815 = vpop.permute.xlu0 %814
      %816 = vrot.lane.b32.xlu0 %v747, 12
      %v817 = vpop.permute.xlu0 %816
      %818 = vrot.lane.b32.xlu0 %v748, 12
      %v819 = vpop.permute.xlu0 %818
      %820 = vrot.lane.b32.xlu0 %v749, 12
      %v821 = vpop.permute.xlu0 %820
      %822 = vrot.lane.b32.xlu0 %v750, 12
      %v823 = vpop.permute.xlu0 %822
      %824 = vrot.lane.b32.xlu0 %v751, 12
      %v825 = vpop.permute.xlu0 %824
      %826 = vrot.lane.b32.xlu0 %v752, 12
      %v827 = vpop.permute.xlu0 %826
      %828 = vrot.lane.b32.xlu0 %v753, 12
      %v829 = vpop.permute.xlu0 %828
      %830 = vrot.lane.b32.xlu0 %v754, 12
      %v831 = vpop.permute.xlu0 %830
      %832 = vrot.lane.b32.xlu0 %v755, 12
      %v833 = vpop.permute.xlu0 %832
      %834 = vrot.lane.b32.xlu0 %v756, 12
      %v835 = vpop.permute.xlu0 %834
      %836 = vrot.lane.b32.xlu0 %v757, 12
      %v837 = vpop.permute.xlu0 %836
      %838 = vrot.lane.b32.xlu0 %v758, 12
      %v839 = vpop.permute.xlu0 %838
      %840 = vrot.lane.b32.xlu0 %v759, 12
      %v841 = vpop.permute.xlu0 %840
      %842 = vrot.lane.b32.xlu0 %v760, 12
      %v843 = vpop.permute.xlu0 %842
      %844 = vrot.lane.b32.xlu0 %v761, 12
      %v845 = vpop.permute.xlu0 %844
      %846 = vrot.lane.b32.xlu0 %v762, 12
      %v847 = vpop.permute.xlu0 %846
      %848 = vrot.lane.b32.xlu0 %v763, 12
      %v849 = vpop.permute.xlu0 %848
      %850 = vrot.lane.b32.xlu0 %v764, 12
      %v851 = vpop.permute.xlu0 %850
      %852 = vrot.lane.b32.xlu0 %v765, 12
      %v853 = vpop.permute.xlu0 %852
      %854 = vrot.lane.b32.xlu0 %v766, 12
      %v855 = vpop.permute.xlu0 %854
      %856 = vrot.lane.b32.xlu0 %v767, 12
      %v857 = vpop.permute.xlu0 %856
      %858 = vrot.lane.b32.xlu0 %v768, 12
      %v859 = vpop.permute.xlu0 %858
      %860 = vrot.lane.b32.xlu0 %v769, 12
      %v861 = vpop.permute.xlu0 %860
      %862 = vrot.lane.b32.xlu0 %v770, 12
      %v863 = vpop.permute.xlu0 %862
      %864 = vrot.lane.b32.xlu0 %v771, 12
      %v865 = vpop.permute.xlu0 %864
      %866 = vrot.lane.b32.xlu0 %v772, 12
      %v867 = vpop.permute.xlu0 %866
      %868 = vrot.lane.b32.xlu0 %v773, 12
      %v869 = vpop.permute.xlu0 %868
      %870 = vrot.lane.b32.xlu0 %v774, 12
      %v871 = vpop.permute.xlu0 %870
      %872 = vrot.lane.b32.xlu0 %v775, 12
      %v873 = vpop.permute.xlu0 %872
      %874 = vrot.lane.b32.xlu0 %v776, 12
      %v875 = vpop.permute.xlu0 %874
      %vm908 = vcmask 97280
      %v909 = vsel %vm908, %v743, %v813
      %v910 = vsel %vm908, %v744, %v815
      %v911 = vsel %vm908, %v745, %v817
      %v912 = vsel %vm908, %v746, %v819
      %v913 = vsel %vm908, %v747, %v821
      %v914 = vsel %vm908, %v748, %v823
      %v915 = vsel %vm908, %v749, %v825
      %v916 = vsel %vm908, %v750, %v827
      %v917 = vsel %vm908, %v751, %v829
      %v918 = vsel %vm908, %v752, %v831
      %v919 = vsel %vm908, %v753, %v833
      %v920 = vsel %vm908, %v754, %v835
      %v921 = vsel %vm908, %v755, %v837
      %v922 = vsel %vm908, %v756, %v839
      %v923 = vsel %vm908, %v757, %v841
      %v924 = vsel %vm908, %v758, %v843
      %v925 = vsel %vm908, %v759, %v845
      %v926 = vsel %vm908, %v760, %v847
      %v927 = vsel %vm908, %v761, %v849
      %v928 = vsel %vm908, %v762, %v851
      %v929 = vsel %vm908, %v763, %v853
      %v930 = vsel %vm908, %v764, %v855
      %v931 = vsel %vm908, %v765, %v857
      %v932 = vsel %vm908, %v766, %v859
      %v933 = vsel %vm908, %v767, %v861
      %v934 = vsel %vm908, %v768, %v863
      %v935 = vsel %vm908, %v769, %v865
      %v936 = vsel %vm908, %v770, %v867
      %v937 = vsel %vm908, %v771, %v869
      %v938 = vsel %vm908, %v772, %v871
      %v939 = vsel %vm908, %v773, %v873
      %v940 = vsel %vm908, %v774, %v875
      %v941 = vld [vmem:[%s1] sm:$0xff]
      %v942 = vld [vmem:[%s1 + $0x8] sm:$0xff]
      %v943 = vld [vmem:[%s1 + $0x10] sm:$0xff]
      %vm944 = vcmask 195584
      %v946 = vsel %vm944, %v909, 0
      %v949 = vsel %vm944, %v910, 0
      %v952 = vsel %vm944, %v911, 0
      %v955 = vsel %vm944, %v912, 0
      %v958 = vsel %vm944, %v913, 0
      %v961 = vsel %vm944, %v914, 0
      %v964 = vsel %vm944, %v915, 0
      %v967 = vsel %vm944, %v916, 0
      %v970 = vsel %vm944, %v917, 0
      %v973 = vsel %vm944, %v918, 0
      %v976 = vsel %vm944, %v919, 0
      %v979 = vsel %vm944, %v920, 0
      %v982 = vsel %vm944, %v921, 0
      %v985 = vsel %vm944, %v922, 0
      %v988 = vsel %vm944, %v923, 0
      %v991 = vsel %vm944, %v924, 0
      %v994 = vsel %vm944, %v925, 0
      %v997 = vsel %vm944, %v926, 0
      %v1000 = vsel %vm944, %v927, 0
      %v1003 = vsel %vm944, %v928, 0
      %v1006 = vsel %vm944, %v929, 0
      %v1009 = vsel %vm944, %v930, 0
      %v1012 = vsel %vm944, %v931, 0
      %v1015 = vsel %vm944, %v932, 0
      %v1018 = vsel %vm944, %v933, 0
      %v1021 = vsel %vm944, %v934, 0
      %v1024 = vsel %vm944, %v935, 0
      %v1027 = vsel %vm944, %v936, 0
      %v1030 = vsel %vm944, %v937, 0
      %v1033 = vsel %vm944, %v938, 0
      %v1036 = vsel %vm944, %v939, 0
      %v1039 = vsel %vm944, %v940, 0
      %1041 = vmatprep.subr.mxu0 0.0
      %1042 = vmatpush1.msra.mxu0 %v941
      %1043 = vmatprep.subr.mxu0 0.0
      %1044 = vmatpush1.msra.mxu0 %v942
      %1045 = vmatprep.subr.mxu0 0.0
      %1046 = vmatpush1.msra.mxu0 %v943
      %1047 = vmatprep.subr.mxu0 0.0
      %1048 = vmatpush1.msra.mxu0 0.0
      %1049 = vmatprep.subr.mxu0 0.0
      %1050 = vmatpush1.msra.mxu0 0.0
      %1051 = vmatprep.subr.mxu0 0.0
      %1052 = vmatpush1.msra.mxu0 0.0
      %1053 = vmatprep.subr.mxu0 0.0
      %1054 = vmatpush1.msra.mxu0 0.0
      %1055 = vmatprep.subr.mxu0 0.0
      %1056 = vmatpush1.msra.mxu0 0.0
      %1057 = vmatprep.subr.mxu0 0.0
      %1058 = vmatpush1.msra.mxu0 0.0
      %1059 = vmatprep.subr.mxu0 0.0
      %1060 = vmatpush1.msra.mxu0 0.0
      %1061 = vmatprep.subr.mxu0 0.0
      %1062 = vmatpush1.msra.mxu0 0.0
      %1063 = vmatprep.subr.mxu0 0.0
      %1064 = vmatpush1.msra.mxu0 0.0
      %1065 = vmatprep.subr.mxu0 0.0
      %1066 = vmatpush1.msra.mxu0 0.0
      %1067 = vmatprep.subr.mxu0 0.0
      %1068 = vmatpush1.msra.mxu0 0.0
      %1069 = vmatprep.subr.mxu0 0.0
      %1070 = vmatpush1.msra.mxu0 0.0
      %1071 = vmatprep.subr.mxu0 0.0
      %1072 = vmatpush1.msra.mxu0 0.0
      %1073 = vmatprep.subr.mxu0 0.0
      %1074 = vmatpush1.msra.mxu0 0.0
      %1075 = vmatprep.subr.mxu0 0.0
      %1076 = vmatpush1.msra.mxu0 0.0
      %1077 = vmatprep.subr.mxu0 0.0
      %1078 = vmatpush1.msra.mxu0 0.0
      %1079 = vmatprep.subr.mxu0 0.0
      %1080 = vmatpush1.msra.mxu0 0.0
      %1081 = vmatprep.subr.mxu0 0.0
      %1082 = vmatpush1.msra.mxu0 0.0
      %1083 = vmatprep.subr.mxu0 0.0
      %1084 = vmatpush1.msra.mxu0 0.0
      %1085 = vmatprep.subr.mxu0 0.0
      %1086 = vmatpush1.msra.mxu0 0.0
      %1087 = vmatprep.subr.mxu0 0.0
      %1088 = vmatpush1.msra.mxu0 0.0
      %1089 = vmatprep.subr.mxu0 0.0
      %1090 = vmatpush1.msra.mxu0 0.0
      %1091 = vmatprep.subr.mxu0 0.0
      %1092 = vmatpush1.msra.mxu0 0.0
      %1093 = vmatprep.subr.mxu0 0.0
      %1094 = vmatpush1.msra.mxu0 0.0
      %1095 = vmatprep.subr.mxu0 0.0
      %1096 = vmatpush1.msra.mxu0 0.0
      %1097 = vmatprep.subr.mxu0 0.0
      %1098 = vmatpush1.msra.mxu0 0.0
      %1099 = vmatprep.subr.mxu0 0.0
      %1100 = vmatpush1.msra.mxu0 0.0
      %1101 = vmatprep.subr.mxu0 0.0
      %1102 = vmatpush1.msra.mxu0 0.0
      %1103 = vmatprep.subr.mxu0 0.0
      %1104 = vmatpush1.msra.mxu0 0.0
      %1105 = vmatprep.mubr.f32.mxu0 0.0
      %1106 = vmatmul.mubr.f32.gmra.mrb[0].mxu0 %v946
      %v1107 = vpop.f32.mrb[0].mxu0
      %v1108 = vadd.f32 0.0, %v1107
      %v1109 = vpop.f32.mrb[0].mxu0
      %1110 = vmatprep.mubr.f32.mxu0 0.0
      %1111 = vmatmul.mubr.f32.gmra.mrb[0].mxu0 %v949
      %v1112 = vpop.f32.mrb[0].mxu0
      %v1113 = vadd.f32 0.0, %v1112
      %v1114 = vpop.f32.mrb[0].mxu0
      %1115 = vmatprep.mubr.f32.mxu0 0.0
      %1116 = vmatmul.mubr.f32.gmra.mrb[0].mxu0 %v952
      %v1117 = vpop.f32.mrb[0].mxu0
      %v1118 = vadd.f32 0.0, %v1117
      %v1119 = vpop.f32.mrb[0].mxu0
      %1120 = vmatprep.mubr.f32.mxu0 0.0
      %1121 = vmatmul.mubr.f32.gmra.mrb[0].mxu0 %v955
      %v1122 = vpop.f32.mrb[0].mxu0
      %v1123 = vadd.f32 0.0, %v1122
      %v1124 = vpop.f32.mrb[0].mxu0
      %1125 = vmatprep.mubr.f32.mxu0 0.0
      %1126 = vmatmul.mubr.f32.gmra.mrb[0].mxu0 %v958
      %v1127 = vpop.f32.mrb[0].mxu0
      %v1128 = vadd.f32 0.0, %v1127
      %v1129 = vpop.f32.mrb[0].mxu0
      %1130 = vmatprep.mubr.f32.mxu0 0.0
      %1131 = vmatmul.mubr.f32.gmra.mrb[0].mxu0 %v961
      %v1132 = vpop.f32.mrb[0].mxu0
      %v1133 = vadd.f32 0.0, %v1132
      %v1134 = vpop.f32.mrb[0].mxu0
      %1135 = vmatprep.mubr.f32.mxu0 0.0
      %1136 = vmatmul.mubr.f32.gmra.mrb[0].mxu0 %v964
      %v1137 = vpop.f32.mrb[0].mxu0
      %v1138 = vadd.f32 0.0, %v1137
      %v1139 = vpop.f32.mrb[0].mxu0
      %1140 = vmatprep.mubr.f32.mxu0 0.0
      %1141 = vmatmul.mubr.f32.gmra.mrb[0].mxu0 %v967
      %v1142 = vpop.f32.mrb[0].mxu0
      %v1143 = vadd.f32 0.0, %v1142
      %v1144 = vpop.f32.mrb[0].mxu0
      %1145 = vmatprep.mubr.f32.mxu0 0.0
      %1146 = vmatmul.mubr.f32.gmra.mrb[0].mxu0 %v970
      %v1147 = vpop.f32.mrb[0].mxu0
      %v1148 = vadd.f32 0.0, %v1147
      %v1149 = vpop.f32.mrb[0].mxu0
      %1150 = vmatprep.mubr.f32.mxu0 0.0
      %1151 = vmatmul.mubr.f32.gmra.mrb[0].mxu0 %v973
      %v1152 = vpop.f32.mrb[0].mxu0
      %v1153 = vadd.f32 0.0, %v1152
      %v1154 = vpop.f32.mrb[0].mxu0
      %1155 = vmatprep.mubr.f32.mxu0 0.0
      %1156 = vmatmul.mubr.f32.gmra.mrb[0].mxu0 %v976
      %v1157 = vpop.f32.mrb[0].mxu0
      %v1158 = vadd.f32 0.0, %v1157
      %v1159 = vpop.f32.mrb[0].mxu0
      %1160 = vmatprep.mubr.f32.mxu0 0.0
      %1161 = vmatmul.mubr.f32.gmra.mrb[0].mxu0 %v979
      %v1162 = vpop.f32.mrb[0].mxu0
      %v1163 = vadd.f32 0.0, %v1162
      %v1164 = vpop.f32.mrb[0].mxu0
      %1165 = vmatprep.mubr.f32.mxu0 0.0
      %1166 = vmatmul.mubr.f32.gmra.mrb[0].mxu0 %v982
      %v1167 = vpop.f32.mrb[0].mxu0
      %v1168 = vadd.f32 0.0, %v1167
      %v1169 = vpop.f32.mrb[0].mxu0
      %1170 = vmatprep.mubr.f32.mxu0 0.0
      %1171 = vmatmul.mubr.f32.gmra.mrb[0].mxu0 %v985
      %v1172 = vpop.f32.mrb[0].mxu0
      %v1173 = vadd.f32 0.0, %v1172
      %v1174 = vpop.f32.mrb[0].mxu0
      %1175 = vmatprep.mubr.f32.mxu0 0.0
      %1176 = vmatmul.mubr.f32.gmra.mrb[0].mxu0 %v988
      %v1177 = vpop.f32.mrb[0].mxu0
      %v1178 = vadd.f32 0.0, %v1177
      %v1179 = vpop.f32.mrb[0].mxu0
      %1180 = vmatprep.mubr.f32.mxu0 0.0
      %1181 = vmatmul.mubr.f32.gmra.mrb[0].mxu0 %v991
      %v1182 = vpop.f32.mrb[0].mxu0
      %v1183 = vadd.f32 0.0, %v1182
      %v1184 = vpop.f32.mrb[0].mxu0
      %1185 = vmatprep.mubr.f32.mxu0 0.0
      %1186 = vmatmul.mubr.f32.gmra.mrb[0].mxu0 %v994
      %v1187 = vpop.f32.mrb[0].mxu0
      %v1188 = vadd.f32 0.0, %v1187
      %v1189 = vpop.f32.mrb[0].mxu0
      %1190 = vmatprep.mubr.f32.mxu0 0.0
      %1191 = vmatmul.mubr.f32.gmra.mrb[0].mxu0 %v997
      %v1192 = vpop.f32.mrb[0].mxu0
      %v1193 = vadd.f32 0.0, %v1192
      %v1194 = vpop.f32.mrb[0].mxu0
      %1195 = vmatprep.mubr.f32.mxu0 0.0
      %1196 = vmatmul.mubr.f32.gmra.mrb[0].mxu0 %v1000
      %v1197 = vpop.f32.mrb[0].mxu0
      %v1198 = vadd.f32 0.0, %v1197
      %v1199 = vpop.f32.mrb[0].mxu0
      %1200 = vmatprep.mubr.f32.mxu0 0.0
      %1201 = vmatmul.mubr.f32.gmra.mrb[0].mxu0 %v1003
      %v1202 = vpop.f32.mrb[0].mxu0
      %v1203 = vadd.f32 0.0, %v1202
      %v1204 = vpop.f32.mrb[0].mxu0
      %1205 = vmatprep.mubr.f32.mxu0 0.0
      %1206 = vmatmul.mubr.f32.gmra.mrb[0].mxu0 %v1006
      %v1207 = vpop.f32.mrb[0].mxu0
      %v1208 = vadd.f32 0.0, %v1207
      %v1209 = vpop.f32.mrb[0].mxu0
      %1210 = vmatprep.mubr.f32.mxu0 0.0
      %1211 = vmatmul.mubr.f32.gmra.mrb[0].mxu0 %v1009
      %v1212 = vpop.f32.mrb[0].mxu0
      %v1213 = vadd.f32 0.0, %v1212
      %v1214 = vpop.f32.mrb[0].mxu0
      %1215 = vmatprep.mubr.f32.mxu0 0.0
      %1216 = vmatmul.mubr.f32.gmra.mrb[0].mxu0 %v1012
      %v1217 = vpop.f32.mrb[0].mxu0
      %v1218 = vadd.f32 0.0, %v1217
      %v1219 = vpop.f32.mrb[0].mxu0
      %1220 = vmatprep.mubr.f32.mxu0 0.0
      %1221 = vmatmul.mubr.f32.gmra.mrb[0].mxu0 %v1015
      %v1222 = vpop.f32.mrb[0].mxu0
      %v1223 = vadd.f32 0.0, %v1222
      %v1224 = vpop.f32.mrb[0].mxu0
      %1225 = vmatprep.mubr.f32.mxu0 0.0
      %1226 = vmatmul.mubr.f32.gmra.mrb[0].mxu0 %v1018
      %v1227 = vpop.f32.mrb[0].mxu0
      %v1228 = vadd.f32 0.0, %v1227
      %v1229 = vpop.f32.mrb[0].mxu0
      %1230 = vmatprep.mubr.f32.mxu0 0.0
      %1231 = vmatmul.mubr.f32.gmra.mrb[0].mxu0 %v1021
      %v1232 = vpop.f32.mrb[0].mxu0
      %v1233 = vadd.f32 0.0, %v1232
      %v1234 = vpop.f32.mrb[0].mxu0
      %1235 = vmatprep.mubr.f32.mxu0 0.0
      %1236 = vmatmul.mubr.f32.gmra.mrb[0].mxu0 %v1024
      %v1237 = vpop.f32.mrb[0].mxu0
      %v1238 = vadd.f32 0.0, %v1237
      %v1239 = vpop.f32.mrb[0].mxu0
      %1240 = vmatprep.mubr.f32.mxu0 0.0
      %1241 = vmatmul.mubr.f32.gmra.mrb[0].mxu0 %v1027
      %v1242 = vpop.f32.mrb[0].mxu0
      %v1243 = vadd.f32 0.0, %v1242
      %v1244 = vpop.f32.mrb[0].mxu0
      %1245 = vmatprep.mubr.f32.mxu0 0.0
      %1246 = vmatmul.mubr.f32.gmra.mrb[0].mxu0 %v1030
      %v1247 = vpop.f32.mrb[0].mxu0
      %v1248 = vadd.f32 0.0, %v1247
      %v1249 = vpop.f32.mrb[0].mxu0
      %1250 = vmatprep.mubr.f32.mxu0 0.0
      %1251 = vmatmul.mubr.f32.gmra.mrb[0].mxu0 %v1033
      %v1252 = vpop.f32.mrb[0].mxu0
      %v1253 = vadd.f32 0.0, %v1252
      %v1254 = vpop.f32.mrb[0].mxu0
      %1255 = vmatprep.mubr.f32.mxu0 0.0
      %1256 = vmatmul.mubr.f32.gmra.mrb[0].mxu0 %v1036
      %v1257 = vpop.f32.mrb[0].mxu0
      %v1258 = vadd.f32 0.0, %v1257
      %v1259 = vpop.f32.mrb[0].mxu0
      %1260 = vmatprep.mubr.f32.mxu0 0.0
      %1261 = vmatmul.mubr.f32.gmra.mrb[0].mxu0 %v1039
      %v1262 = vpop.f32.mrb[0].mxu0
      %v1263 = vadd.f32 0.0, %v1262
      %v1264 = vpop.f32.mrb[0].mxu0
      %1265 = vdwg.mxu0
      %v1267 = vlaneseq
      %v1268 = vshrl.u32 %v1267, 7
      %v1269 = vsub.s32 0, %v1268
      %v1270 = vrot.slane %v779, %v1269
      %v1272 = vadd.f32 %v1108, %v1270
      %v1273 = vadd.f32 %v1113, %v1270
      %v1274 = vadd.f32 %v1118, %v1270
      %v1275 = vadd.f32 %v1123, %v1270
      %v1276 = vadd.f32 %v1128, %v1270
      %v1277 = vadd.f32 %v1133, %v1270
      %v1278 = vadd.f32 %v1138, %v1270
      %v1279 = vadd.f32 %v1143, %v1270
      %v1280 = vadd.f32 %v1148, %v1270
      %v1281 = vadd.f32 %v1153, %v1270
      %v1282 = vadd.f32 %v1158, %v1270
      %v1283 = vadd.f32 %v1163, %v1270
      %v1284 = vadd.f32 %v1168, %v1270
      %v1285 = vadd.f32 %v1173, %v1270
      %v1286 = vadd.f32 %v1178, %v1270
      %v1287 = vadd.f32 %v1183, %v1270
      %v1288 = vadd.f32 %v1188, %v1270
      %v1289 = vadd.f32 %v1193, %v1270
      %v1290 = vadd.f32 %v1198, %v1270
      %v1291 = vadd.f32 %v1203, %v1270
      %v1292 = vadd.f32 %v1208, %v1270
      %v1293 = vadd.f32 %v1213, %v1270
      %v1294 = vadd.f32 %v1218, %v1270
      %v1295 = vadd.f32 %v1223, %v1270
      %v1296 = vadd.f32 %v1228, %v1270
      %v1297 = vadd.f32 %v1233, %v1270
      %v1298 = vadd.f32 %v1238, %v1270
      %v1299 = vadd.f32 %v1243, %v1270
      %v1300 = vadd.f32 %v1248, %v1270
      %v1301 = vadd.f32 %v1253, %v1270
      %v1302 = vadd.f32 %v1258, %v1270
      %v1303 = vadd.f32 %v1263, %v1270
      %1304 = vst.msk [vmem:[%s194] sm:$0xff] %vm742, %v1272
      %1305 = vst.msk [vmem:[%s194 + $0x8] sm:$0xff] %vm742, %v1273
      %1306 = vst.msk [vmem:[%s194 + $0x20] sm:$0xff] %vm742, %v1274
      %1307 = vst.msk [vmem:[%s194 + $0x28] sm:$0xff] %vm742, %v1275
      %1308 = vst.msk [vmem:[%s194 + $0x40] sm:$0xff] %vm742, %v1276
      %1309 = vst.msk [vmem:[%s194 + $0x48] sm:$0xff] %vm742, %v1277
      %1310 = vst.msk [vmem:[%s194 + $0x60] sm:$0xff] %vm742, %v1278
      %1311 = vst.msk [vmem:[%s194 + $0x68] sm:$0xff] %vm742, %v1279
      %1312 = vst.msk [vmem:[%s194 + $0x80] sm:$0xff] %vm742, %v1280
      %1313 = vst.msk [vmem:[%s194 + $0x88] sm:$0xff] %vm742, %v1281
      %1314 = vst.msk [vmem:[%s194 + $0xa0] sm:$0xff] %vm742, %v1282
      %1315 = vst.msk [vmem:[%s194 + $0xa8] sm:$0xff] %vm742, %v1283
      %1316 = vst.msk [vmem:[%s194 + $0xc0] sm:$0xff] %vm742, %v1284
      %1317 = vst.msk [vmem:[%s194 + $0xc8] sm:$0xff] %vm742, %v1285
      %1318 = vst.msk [vmem:[%s194 + $0xe0] sm:$0xff] %vm742, %v1286
      %1319 = vst.msk [vmem:[%s194 + $0xe8] sm:$0xff] %vm742, %v1287
      %1320 = vst.msk [vmem:[%s194 + $0x100] sm:$0xff] %vm742, %v1288
      %1321 = vst.msk [vmem:[%s194 + $0x108] sm:$0xff] %vm742, %v1289
      %1322 = vst.msk [vmem:[%s194 + $0x120] sm:$0xff] %vm742, %v1290
      %1323 = vst.msk [vmem:[%s194 + $0x128] sm:$0xff] %vm742, %v1291
      %1324 = vst.msk [vmem:[%s194 + $0x140] sm:$0xff] %vm742, %v1292
      %1325 = vst.msk [vmem:[%s194 + $0x148] sm:$0xff] %vm742, %v1293
      %1326 = vst.msk [vmem:[%s194 + $0x160] sm:$0xff] %vm742, %v1294
      %1327 = vst.msk [vmem:[%s194 + $0x168] sm:$0xff] %vm742, %v1295
      %1328 = vst.msk [vmem:[%s194 + $0x180] sm:$0xff] %vm742, %v1296
      %1329 = vst.msk [vmem:[%s194 + $0x188] sm:$0xff] %vm742, %v1297
      %1330 = vst.msk [vmem:[%s194 + $0x1a0] sm:$0xff] %vm742, %v1298
      %1331 = vst.msk [vmem:[%s194 + $0x1a8] sm:$0xff] %vm742, %v1299
      %1332 = vst.msk [vmem:[%s194 + $0x1c0] sm:$0xff] %vm742, %v1300
      %1333 = vst.msk [vmem:[%s194 + $0x1c8] sm:$0xff] %vm742, %v1301
      %1334 = vst.msk [vmem:[%s194 + $0x1e0] sm:$0xff] %vm742, %v1302
      %1335 = vst.msk [vmem:[%s194 + $0x1e8] sm:$0xff] %vm742, %v1303
      %1338 = vrot.lane.b32.xlu0 %v777, 12
      %v1339 = vpop.permute.xlu0 %1338
      %1340 = vrot.lane.b32.xlu0 %v778, 12
      %v1341 = vpop.permute.xlu0 %1340
      %v1344 = vsel %vm908, %v775, %v1339
      %v1345 = vsel %vm908, %v776, %v1341
      %s1346 = scalar_lea.vmem %s1, 24
      %v1347 = vld [vmem:[%s1346] sm:$0xff]
      %v1348 = vld [vmem:[%s1346 + $0x8] sm:$0xff]
      %v1349 = vld [vmem:[%s1346 + $0x10] sm:$0xff]
      %v1351 = vsel %vm944, %v1344, 0
      %v1354 = vsel %vm944, %v1345, 0
      %1356 = vmatprep.subr.mxu0 0.0
      %1357 = vmatpush1.msra.mxu0 %v1347
      %1358 = vmatprep.subr.mxu0 0.0
      %1359 = vmatpush1.msra.mxu0 %v1348
      %1360 = vmatprep.subr.mxu0 0.0
      %1361 = vmatpush1.msra.mxu0 %v1349
      %1362 = vmatprep.subr.mxu0 0.0
      %1363 = vmatpush1.msra.mxu0 0.0
      %1364 = vmatprep.subr.mxu0 0.0
      %1365 = vmatpush1.msra.mxu0 0.0
      %1366 = vmatprep.subr.mxu0 0.0
      %1367 = vmatpush1.msra.mxu0 0.0
      %1368 = vmatprep.subr.mxu0 0.0
      %1369 = vmatpush1.msra.mxu0 0.0
      %1370 = vmatprep.subr.mxu0 0.0
      %1371 = vmatpush1.msra.mxu0 0.0
      %1372 = vmatprep.subr.mxu0 0.0
      %1373 = vmatpush1.msra.mxu0 0.0
      %1374 = vmatprep.subr.mxu0 0.0
      %1375 = vmatpush1.msra.mxu0 0.0
      %1376 = vmatprep.subr.mxu0 0.0
      %1377 = vmatpush1.msra.mxu0 0.0
      %1378 = vmatprep.subr.mxu0 0.0
      %1379 = vmatpush1.msra.mxu0 0.0
      %1380 = vmatprep.subr.mxu0 0.0
      %1381 = vmatpush1.msra.mxu0 0.0
      %1382 = vmatprep.subr.mxu0 0.0
      %1383 = vmatpush1.msra.mxu0 0.0
      %1384 = vmatprep.subr.mxu0 0.0
      %1385 = vmatpush1.msra.mxu0 0.0
      %1386 = vmatprep.subr.mxu0 0.0
      %1387 = vmatpush1.msra.mxu0 0.0
      %1388 = vmatprep.subr.mxu0 0.0
      %1389 = vmatpush1.msra.mxu0 0.0
      %1390 = vmatprep.subr.mxu0 0.0
      %1391 = vmatpush1.msra.mxu0 0.0
      %1392 = vmatprep.subr.mxu0 0.0
      %1393 = vmatpush1.msra.mxu0 0.0
      %1394 = vmatprep.subr.mxu0 0.0
      %1395 = vmatpush1.msra.mxu0 0.0
      %1396 = vmatprep.subr.mxu0 0.0
      %1397 = vmatpush1.msra.mxu0 0.0
      %1398 = vmatprep.subr.mxu0 0.0
      %1399 = vmatpush1.msra.mxu0 0.0
      %1400 = vmatprep.subr.mxu0 0.0
      %1401 = vmatpush1.msra.mxu0 0.0
      %1402 = vmatprep.subr.mxu0 0.0
      %1403 = vmatpush1.msra.mxu0 0.0
      %1404 = vmatprep.subr.mxu0 0.0
      %1405 = vmatpush1.msra.mxu0 0.0
      %1406 = vmatprep.subr.mxu0 0.0
      %1407 = vmatpush1.msra.mxu0 0.0
      %1408 = vmatprep.subr.mxu0 0.0
      %1409 = vmatpush1.msra.mxu0 0.0
      %1410 = vmatprep.subr.mxu0 0.0
      %1411 = vmatpush1.msra.mxu0 0.0
      %1412 = vmatprep.subr.mxu0 0.0
      %1413 = vmatpush1.msra.mxu0 0.0
      %1414 = vmatprep.subr.mxu0 0.0
      %1415 = vmatpush1.msra.mxu0 0.0
      %1416 = vmatprep.subr.mxu0 0.0
      %1417 = vmatpush1.msra.mxu0 0.0
      %1418 = vmatprep.subr.mxu0 0.0
      %1419 = vmatpush1.msra.mxu0 0.0
      %1420 = vmatprep.mubr.f32.mxu0 0.0
      %1421 = vmatmul.mubr.f32.gmra.mrb[0].mxu0 %v952
      %v1422 = vpop.f32.mrb[0].mxu0
      %v1423 = vadd.f32 0.0, %v1422
      %v1424 = vpop.f32.mrb[0].mxu0
      %1425 = vmatprep.mubr.f32.mxu0 0.0
      %1426 = vmatmul.mubr.f32.gmra.mrb[0].mxu0 %v955
      %v1427 = vpop.f32.mrb[0].mxu0
      %v1428 = vadd.f32 0.0, %v1427
      %v1429 = vpop.f32.mrb[0].mxu0
      %1430 = vmatprep.mubr.f32.mxu0 0.0
      %1431 = vmatmul.mubr.f32.gmra.mrb[0].mxu0 %v958
      %v1432 = vpop.f32.mrb[0].mxu0
      %v1433 = vadd.f32 0.0, %v1432
      %v1434 = vpop.f32.mrb[0].mxu0
      %1435 = vmatprep.mubr.f32.mxu0 0.0
      %1436 = vmatmul.mubr.f32.gmra.mrb[0].mxu0 %v961
      %v1437 = vpop.f32.mrb[0].mxu0
      %v1438 = vadd.f32 0.0, %v1437
      %v1439 = vpop.f32.mrb[0].mxu0
      %1440 = vmatprep.mubr.f32.mxu0 0.0
      %1441 = vmatmul.mubr.f32.gmra.mrb[0].mxu0 %v964
      %v1442 = vpop.f32.mrb[0].mxu0
      %v1443 = vadd.f32 0.0, %v1442
      %v1444 = vpop.f32.mrb[0].mxu0
      %1445 = vmatprep.mubr.f32.mxu0 0.0
      %1446 = vmatmul.mubr.f32.gmra.mrb[0].mxu0 %v967
      %v1447 = vpop.f32.mrb[0].mxu0
      %v1448 = vadd.f32 0.0, %v1447
      %v1449 = vpop.f32.mrb[0].mxu0
      %1450 = vmatprep.mubr.f32.mxu0 0.0
      %1451 = vmatmul.mubr.f32.gmra.mrb[0].mxu0 %v970
      %v1452 = vpop.f32.mrb[0].mxu0
      %v1453 = vadd.f32 0.0, %v1452
      %v1454 = vpop.f32.mrb[0].mxu0
      %1455 = vmatprep.mubr.f32.mxu0 0.0
      %1456 = vmatmul.mubr.f32.gmra.mrb[0].mxu0 %v973
      %v1457 = vpop.f32.mrb[0].mxu0
      %v1458 = vadd.f32 0.0, %v1457
      %v1459 = vpop.f32.mrb[0].mxu0
      %1460 = vmatprep.mubr.f32.mxu0 0.0
      %1461 = vmatmul.mubr.f32.gmra.mrb[0].mxu0 %v976
      %v1462 = vpop.f32.mrb[0].mxu0
      %v1463 = vadd.f32 0.0, %v1462
      %v1464 = vpop.f32.mrb[0].mxu0
      %1465 = vmatprep.mubr.f32.mxu0 0.0
      %1466 = vmatmul.mubr.f32.gmra.mrb[0].mxu0 %v979
      %v1467 = vpop.f32.mrb[0].mxu0
      %v1468 = vadd.f32 0.0, %v1467
      %v1469 = vpop.f32.mrb[0].mxu0
      %1470 = vmatprep.mubr.f32.mxu0 0.0
      %1471 = vmatmul.mubr.f32.gmra.mrb[0].mxu0 %v982
      %v1472 = vpop.f32.mrb[0].mxu0
      %v1473 = vadd.f32 0.0, %v1472
      %v1474 = vpop.f32.mrb[0].mxu0
      %1475 = vmatprep.mubr.f32.mxu0 0.0
      %1476 = vmatmul.mubr.f32.gmra.mrb[0].mxu0 %v985
      %v1477 = vpop.f32.mrb[0].mxu0
      %v1478 = vadd.f32 0.0, %v1477
      %v1479 = vpop.f32.mrb[0].mxu0
      %1480 = vmatprep.mubr.f32.mxu0 0.0
      %1481 = vmatmul.mubr.f32.gmra.mrb[0].mxu0 %v988
      %v1482 = vpop.f32.mrb[0].mxu0
      %v1483 = vadd.f32 0.0, %v1482
      %v1484 = vpop.f32.mrb[0].mxu0
      %1485 = vmatprep.mubr.f32.mxu0 0.0
      %1486 = vmatmul.mubr.f32.gmra.mrb[0].mxu0 %v991
      %v1487 = vpop.f32.mrb[0].mxu0
      %v1488 = vadd.f32 0.0, %v1487
      %v1489 = vpop.f32.mrb[0].mxu0
      %1490 = vmatprep.mubr.f32.mxu0 0.0
      %1491 = vmatmul.mubr.f32.gmra.mrb[0].mxu0 %v994
      %v1492 = vpop.f32.mrb[0].mxu0
      %v1493 = vadd.f32 0.0, %v1492
      %v1494 = vpop.f32.mrb[0].mxu0
      %1495 = vmatprep.mubr.f32.mxu0 0.0
      %1496 = vmatmul.mubr.f32.gmra.mrb[0].mxu0 %v997
      %v1497 = vpop.f32.mrb[0].mxu0
      %v1498 = vadd.f32 0.0, %v1497
      %v1499 = vpop.f32.mrb[0].mxu0
      %1500 = vmatprep.mubr.f32.mxu0 0.0
      %1501 = vmatmul.mubr.f32.gmra.mrb[0].mxu0 %v1000
      %v1502 = vpop.f32.mrb[0].mxu0
      %v1503 = vadd.f32 0.0, %v1502
      %v1504 = vpop.f32.mrb[0].mxu0
      %1505 = vmatprep.mubr.f32.mxu0 0.0
      %1506 = vmatmul.mubr.f32.gmra.mrb[0].mxu0 %v1003
      %v1507 = vpop.f32.mrb[0].mxu0
      %v1508 = vadd.f32 0.0, %v1507
      %v1509 = vpop.f32.mrb[0].mxu0
      %1510 = vmatprep.mubr.f32.mxu0 0.0
      %1511 = vmatmul.mubr.f32.gmra.mrb[0].mxu0 %v1006
      %v1512 = vpop.f32.mrb[0].mxu0
      %v1513 = vadd.f32 0.0, %v1512
      %v1514 = vpop.f32.mrb[0].mxu0
      %1515 = vmatprep.mubr.f32.mxu0 0.0
      %1516 = vmatmul.mubr.f32.gmra.mrb[0].mxu0 %v1009
      %v1517 = vpop.f32.mrb[0].mxu0
      %v1518 = vadd.f32 0.0, %v1517
      %v1519 = vpop.f32.mrb[0].mxu0
      %1520 = vmatprep.mubr.f32.mxu0 0.0
      %1521 = vmatmul.mubr.f32.gmra.mrb[0].mxu0 %v1012
      %v1522 = vpop.f32.mrb[0].mxu0
      %v1523 = vadd.f32 0.0, %v1522
      %v1524 = vpop.f32.mrb[0].mxu0
      %1525 = vmatprep.mubr.f32.mxu0 0.0
      %1526 = vmatmul.mubr.f32.gmra.mrb[0].mxu0 %v1015
      %v1527 = vpop.f32.mrb[0].mxu0
      %v1528 = vadd.f32 0.0, %v1527
      %v1529 = vpop.f32.mrb[0].mxu0
      %1530 = vmatprep.mubr.f32.mxu0 0.0
      %1531 = vmatmul.mubr.f32.gmra.mrb[0].mxu0 %v1018
      %v1532 = vpop.f32.mrb[0].mxu0
      %v1533 = vadd.f32 0.0, %v1532
      %v1534 = vpop.f32.mrb[0].mxu0
      %1535 = vmatprep.mubr.f32.mxu0 0.0
      %1536 = vmatmul.mubr.f32.gmra.mrb[0].mxu0 %v1021
      %v1537 = vpop.f32.mrb[0].mxu0
      %v1538 = vadd.f32 0.0, %v1537
      %v1539 = vpop.f32.mrb[0].mxu0
      %1540 = vmatprep.mubr.f32.mxu0 0.0
      %1541 = vmatmul.mubr.f32.gmra.mrb[0].mxu0 %v1024
      %v1542 = vpop.f32.mrb[0].mxu0
      %v1543 = vadd.f32 0.0, %v1542
      %v1544 = vpop.f32.mrb[0].mxu0
      %1545 = vmatprep.mubr.f32.mxu0 0.0
      %1546 = vmatmul.mubr.f32.gmra.mrb[0].mxu0 %v1027
      %v1547 = vpop.f32.mrb[0].mxu0
      %v1548 = vadd.f32 0.0, %v1547
      %v1549 = vpop.f32.mrb[0].mxu0
      %1550 = vmatprep.mubr.f32.mxu0 0.0
      %1551 = vmatmul.mubr.f32.gmra.mrb[0].mxu0 %v1030
      %v1552 = vpop.f32.mrb[0].mxu0
      %v1553 = vadd.f32 0.0, %v1552
      %v1554 = vpop.f32.mrb[0].mxu0
      %1555 = vmatprep.mubr.f32.mxu0 0.0
      %1556 = vmatmul.mubr.f32.gmra.mrb[0].mxu0 %v1033
      %v1557 = vpop.f32.mrb[0].mxu0
      %v1558 = vadd.f32 0.0, %v1557
      %v1559 = vpop.f32.mrb[0].mxu0
      %1560 = vmatprep.mubr.f32.mxu0 0.0
      %1561 = vmatmul.mubr.f32.gmra.mrb[0].mxu0 %v1036
      %v1562 = vpop.f32.mrb[0].mxu0
      %v1563 = vadd.f32 0.0, %v1562
      %v1564 = vpop.f32.mrb[0].mxu0
      %1565 = vmatprep.mubr.f32.mxu0 0.0
      %1566 = vmatmul.mubr.f32.gmra.mrb[0].mxu0 %v1039
      %v1567 = vpop.f32.mrb[0].mxu0
      %v1568 = vadd.f32 0.0, %v1567
      %v1569 = vpop.f32.mrb[0].mxu0
      %1570 = vmatprep.mubr.f32.mxu0 0.0
      %1571 = vmatmul.mubr.f32.gmra.mrb[0].mxu0 %v1351
      %v1572 = vpop.f32.mrb[0].mxu0
      %v1573 = vadd.f32 0.0, %v1572
      %v1574 = vpop.f32.mrb[0].mxu0
      %1575 = vmatprep.mubr.f32.mxu0 0.0
      %1576 = vmatmul.mubr.f32.gmra.mrb[0].mxu0 %v1354
      %v1577 = vpop.f32.mrb[0].mxu0
      %v1578 = vadd.f32 0.0, %v1577
      %v1579 = vpop.f32.mrb[0].mxu0
      %1580 = vdwg.mxu0
      %v1581 = vadd.f32 %v1423, %v1270
      %v1582 = vadd.f32 %v1428, %v1270
      %v1583 = vadd.f32 %v1433, %v1270
      %v1584 = vadd.f32 %v1438, %v1270
      %v1585 = vadd.f32 %v1443, %v1270
      %v1586 = vadd.f32 %v1448, %v1270
      %v1587 = vadd.f32 %v1453, %v1270
      %v1588 = vadd.f32 %v1458, %v1270
      %v1589 = vadd.f32 %v1463, %v1270
      %v1590 = vadd.f32 %v1468, %v1270
      %v1591 = vadd.f32 %v1473, %v1270
      %v1592 = vadd.f32 %v1478, %v1270
      %v1593 = vadd.f32 %v1483, %v1270
      %v1594 = vadd.f32 %v1488, %v1270
      %v1595 = vadd.f32 %v1493, %v1270
      %v1596 = vadd.f32 %v1498, %v1270
      %v1597 = vadd.f32 %v1503, %v1270
      %v1598 = vadd.f32 %v1508, %v1270
      %v1599 = vadd.f32 %v1513, %v1270
      %v1600 = vadd.f32 %v1518, %v1270
      %v1601 = vadd.f32 %v1523, %v1270
      %v1602 = vadd.f32 %v1528, %v1270
      %v1603 = vadd.f32 %v1533, %v1270
      %v1604 = vadd.f32 %v1538, %v1270
      %v1605 = vadd.f32 %v1543, %v1270
      %v1606 = vadd.f32 %v1548, %v1270
      %v1607 = vadd.f32 %v1553, %v1270
      %v1608 = vadd.f32 %v1558, %v1270
      %v1609 = vadd.f32 %v1563, %v1270
      %v1610 = vadd.f32 %v1568, %v1270
      %v1611 = vadd.f32 %v1573, %v1270
      %v1612 = vadd.f32 %v1578, %v1270
      %s1613 = scalar_lea.vmem %s194, 16
      %1614 = vst.msk [vmem:[%s1613] sm:$0xff] %vm742, %v1581
      %1615 = vst.msk [vmem:[%s1613 + $0x8] sm:$0xff] %vm742, %v1582
      %1616 = vst.msk [vmem:[%s1613 + $0x20] sm:$0xff] %vm742, %v1583
      %1617 = vst.msk [vmem:[%s1613 + $0x28] sm:$0xff] %vm742, %v1584
      %1618 = vst.msk [vmem:[%s1613 + $0x40] sm:$0xff] %vm742, %v1585
      %1619 = vst.msk [vmem:[%s1613 + $0x48] sm:$0xff] %vm742, %v1586
      %1620 = vst.msk [vmem:[%s1613 + $0x60] sm:$0xff] %vm742, %v1587
      %1621 = vst.msk [vmem:[%s1613 + $0x68] sm:$0xff] %vm742, %v1588
      %1622 = vst.msk [vmem:[%s1613 + $0x80] sm:$0xff] %vm742, %v1589
      %1623 = vst.msk [vmem:[%s1613 + $0x88] sm:$0xff] %vm742, %v1590
      %1624 = vst.msk [vmem:[%s1613 + $0xa0] sm:$0xff] %vm742, %v1591
      %1625 = vst.msk [vmem:[%s1613 + $0xa8] sm:$0xff] %vm742, %v1592
      %1626 = vst.msk [vmem:[%s1613 + $0xc0] sm:$0xff] %vm742, %v1593
      %1627 = vst.msk [vmem:[%s1613 + $0xc8] sm:$0xff] %vm742, %v1594
      %1628 = vst.msk [vmem:[%s1613 + $0xe0] sm:$0xff] %vm742, %v1595
      %1629 = vst.msk [vmem:[%s1613 + $0xe8] sm:$0xff] %vm742, %v1596
      %1630 = vst.msk [vmem:[%s1613 + $0x100] sm:$0xff] %vm742, %v1597
      %1631 = vst.msk [vmem:[%s1613 + $0x108] sm:$0xff] %vm742, %v1598
      %1632 = vst.msk [vmem:[%s1613 + $0x120] sm:$0xff] %vm742, %v1599
      %1633 = vst.msk [vmem:[%s1613 + $0x128] sm:$0xff] %vm742, %v1600
      %1634 = vst.msk [vmem:[%s1613 + $0x140] sm:$0xff] %vm742, %v1601
      %1635 = vst.msk [vmem:[%s1613 + $0x148] sm:$0xff] %vm742, %v1602
      %1636 = vst.msk [vmem:[%s1613 + $0x160] sm:$0xff] %vm742, %v1603
      %1637 = vst.msk [vmem:[%s1613 + $0x168] sm:$0xff] %vm742, %v1604
      %1638 = vst.msk [vmem:[%s1613 + $0x180] sm:$0xff] %vm742, %v1605
      %1639 = vst.msk [vmem:[%s1613 + $0x188] sm:$0xff] %vm742, %v1606
      %1640 = vst.msk [vmem:[%s1613 + $0x1a0] sm:$0xff] %vm742, %v1607
      %1641 = vst.msk [vmem:[%s1613 + $0x1a8] sm:$0xff] %vm742, %v1608
      %1642 = vst.msk [vmem:[%s1613 + $0x1c0] sm:$0xff] %vm742, %v1609
      %1643 = vst.msk [vmem:[%s1613 + $0x1c8] sm:$0xff] %vm742, %v1610
      %1644 = vst.msk [vmem:[%s1613 + $0x1e0] sm:$0xff] %vm742, %v1611
      %1645 = vst.msk [vmem:[%s1613 + $0x1e8] sm:$0xff] %vm742, %v1612
      %s1646 = smul.u32 16, %s19
      %p1647 = scmp.lt.s32.totalorder %s18, 1
      %s1648 = scalar_select %p1647, %s18, 1
      %p1649 = scmp.lt.s32.totalorder %s1646, 15
      %s1650 = scalar_select %p1649, %s1646, 15
      %s1651 = smul.addr %s1650, 4
      %s1652 = smul.addr %s1648, 64
      %s1653 = sadd.s32 %s1651, %s1652
      %s1654 = smul.addr %s1653, 8
      %s1655 = scalar_lea.vmem %s3, %s1654
      // Predicated region
      $region33: #{tpu_custom_call.1} parent=31 // pred_check
        %p1656 = pneg %p114
      $region34: #{tpu_custom_call.1} parent=31 // pred_check_branch
        %1658 = sbr.rel (%p1656) target = $region36
      $region35: #{tpu_custom_call.1} parent=31 // pred_region
        %s1659 = smul.u32 16, %s19
      $region36: #{tpu_custom_call.1} parent=31 // pred_fallthru
        _
    $region32: #{tpu_custom_call.1} parent=5 // pred_fallthru
      _
    %p1660 = scmp.le.s32.totalorder 2, %s9
    // Predicated region
    $region37: #{tpu_custom_call.1} parent=5 // pred_check
      %p1661 = pneg %p1660
    $region38: #{tpu_custom_call.1} parent=5 // pred_check_branch
      %1663 = sbr.rel (%p1661) target = $region40
    $region39: #{tpu_custom_call.1} parent=5 // pred_region
      %s1664 = ssub.s32 %s9, 2
      // Predicated region
      $region41: #{tpu_custom_call.1} parent=39 // pred_check
        %p1665 = pneg %p120
      $region42: #{tpu_custom_call.1} parent=39 // pred_check_branch
        %1667 = sbr.rel (%p1665) target = $region44
      $region43: #{tpu_custom_call.1} parent=39 // pred_region
        %s1668 = smul.u32 16, %s21
        %p1669 = scmp.lt.s32.totalorder %s20, 1
        %s1670 = scalar_select %p1669, %s20, 1
        %p1671 = scmp.lt.s32.totalorder %s1668, 15
        %s1672 = scalar_select %p1671, %s1668, 15
        %s1673 = smul.addr %s1672, 4
        %s1674 = smul.addr %s1670, 64
        %s1675 = sadd.s32 %s1673, %s1674
        %s1676 = smul.addr %s1675, 8
        %s1677 = scalar_lea.vmem %s3, %s1676
      $region44: #{tpu_custom_call.1} parent=39 // pred_fallthru
        _
    $region40: #{tpu_custom_call.1} parent=5 // pred_fallthru
      _
  $region6: #{tpu_custom_call.1} parent=0 // loop_footer
    %s13 = sadd.s32 1, %s9
  $region7: #{tpu_custom_call.1} parent=0 // loop_footer_branch
    %8 = sbr.rel target = $region3
  $region8: #{tpu_custom_call.1} parent=0 // loop_exit
    _

</llo_original>
